<compile_context>
chip_gen: v7x
topology: tpu7x:2x2x1
jax: 0.10.0
libtpu: 0.0.40
codegen_flags: <defaults>
</compile_context>

<pallas_src>
import functools

import jax
import jax.numpy as jnp
from jax.experimental import pallas as pl
from jax.experimental.pallas import tpu as pltpu


def _round_up(v, m):
    return ((v + m - 1) // m) * m


def _choose_tile_h(ho, wo, wp, cin, kh, kw, cout_pad, budget_bytes=6 * 1024 * 1024):
    """Largest tile_h dividing `ho` whose per-step VMEM footprint fits the budget."""
    cin_lanes = _round_up(cin, 128)
    kkc_lanes = _round_up(kh * kw * cin, 128)
    best = 1
    for th in range(1, ho + 1):
        if ho % th:
            continue
        th_in = th + kh - 1
        in_bytes = 2 * _round_up(th_in * wp, 8) * cin_lanes * 2     # double-buffered bf16 input
        out_bytes = 2 * _round_up(th * wo, 8) * cout_pad * 4        # double-buffered f32 output
        patch_bytes = _round_up(th * wo, 8) * kkc_lanes * 2         # bf16 im2col scratch
        if in_bytes + out_bytes + patch_bytes <= budget_bytes:
            best = th
    return best


def _conv_kernel(x_ref, w_ref, b_ref, o_ref, patch_ref):
    """One spatial tile of the convolution.

    x_ref:     (1, tile_h + KH - 1, Wp, Cin)   bf16 halo'd input window
    w_ref:     (KH*KW*Cin, Cout_pad)           bf16 folded weights
    b_ref:     (1, Cout_pad)                   f32 bias (zero-padded)
    o_ref:     (1, tile_h, Wo, Cout_pad)       f32 output tile (lane-dense last dim)
    patch_ref: (tile_h*Wo, KH*KW*Cin)          bf16 VMEM im2col scratch
    """
    _, th_in, wp, cin = x_ref.shape
    _, th, wo, cpad = o_ref.shape
    kh_n = th_in - th + 1
    kw_n = wp - wo + 1

    x = x_ref[0]                                  # (th_in, Wp, Cin), loaded once
    # Build the im2col patch matrix ONCE (static Python loop over the KH*KW taps).
    for kh in range(kh_n):
        for kw in range(kw_n):
            c0 = (kh * kw_n + kw) * cin
            patch_ref[:, c0:c0 + cin] = (
                x[kh:kh + th, kw:kw + wo, :].reshape(th * wo, cin))

    # Single MXU matmul: (tile_h*Wo, KH*KW*Cin) @ (KH*KW*Cin, Cout_pad), f32 accumulate.
    acc = jnp.dot(patch_ref[...], w_ref[...], preferred_element_type=jnp.float32)
    acc = acc + b_ref[...]
    o_ref[0] = acc.reshape(th, wo, cpad).astype(o_ref.dtype)


def upsample_conv_layer(x_nchw, weight_oihw, bias, *, kernel_size, stride,
                        upsample=None, tile_h=None):
    """Forward pass equivalent to the PyTorch UpsampleConvLayer module.

    x_nchw:      (N, Cin, H, W) float32
    weight_oihw: (Cout, Cin, KH, KW) float32   (PyTorch Conv2d layout)
    bias:        (Cout,) float32
    returns:     (N, Cout, H_out, W_out) float32 (NCHW, like PyTorch)
    """
    N, Cin, H, W = x_nchw.shape
    Cout, Cin_w, KH, KW = weight_oihw.shape
    assert Cin_w == Cin and KH == kernel_size and KW == kernel_size

    # --- glue (fuses into one XLA pass): bf16 cast, nearest upsample, reflect pad, NHWC ---
    x = x_nchw.astype(jnp.bfloat16)
    if upsample:
        x = jnp.repeat(x, upsample, axis=2)
        x = jnp.repeat(x, upsample, axis=3)
    pad = kernel_size // 2
    x = jnp.pad(x, ((0, 0), (0, 0), (pad, pad), (pad, pad)), mode="reflect")
    x = jnp.transpose(x, (0, 2, 3, 1))            # (N, Hp, Wp, Cin), channels on lanes
    _, Hp, Wp, _ = x.shape

    # Stride-1 conv extent over the padded input; stride>1 subsampled afterwards (see TODO).
    Ho = Hp - KH + 1
    Wo = Wp - KW + 1

    Cout_pad = _round_up(Cout, 128)               # lane-dense output slab

    if tile_h is None:
        tile_h = _choose_tile_h(Ho, Wo, Wp, Cin, KH, KW, Cout_pad)
    else:
        while Ho % tile_h:                        # snap to a divisor of Ho
            tile_h -= 1
    T = Ho // tile_h
    th_in = tile_h + KH - 1

    # Overlapping halo windows along H (gathered in the same fused glue pass).
    row_idx = jnp.arange(T)[:, None] * tile_h + jnp.arange(th_in)[None, :]   # (T, th_in)
    x_tiles = x[:, row_idx]                                                  # (N, T, th_in, Wp, Cin)
    x_tiles = x_tiles.reshape(N * T, th_in, Wp, Cin)

    # Weights: OIHW -> (KH, KW, Cin, Cout) -> (KH*KW*Cin, Cout_pad) bf16; bias -> (1, Cout_pad) f32.
    w = jnp.transpose(weight_oihw, (2, 3, 1, 0)).reshape(KH * KW * Cin, Cout)
    w = jnp.pad(w, ((0, 0), (0, Cout_pad - Cout))).astype(jnp.bfloat16)
    b = jnp.pad(bias.astype(jnp.float32), (0, Cout_pad - Cout)).reshape(1, Cout_pad)

    out = pl.pallas_call(
        _conv_kernel,
        out_shape=jax.ShapeDtypeStruct((N * T, tile_h, Wo, Cout_pad), jnp.float32),
        grid_spec=pltpu.PrefetchScalarGridSpec(
            num_scalar_prefetch=0,
            grid=(N * T,),
            in_specs=[
                pl.BlockSpec((1, th_in, Wp, Cin), lambda i: (i, 0, 0, 0)),
                pl.BlockSpec((KH * KW * Cin, Cout_pad), lambda i: (0, 0)),   # resident
                pl.BlockSpec((1, Cout_pad), lambda i: (0, 0)),               # resident
            ],
            out_specs=pl.BlockSpec((1, tile_h, Wo, Cout_pad), lambda i: (i, 0, 0, 0)),
            scratch_shapes=[pltpu.VMEM((tile_h * Wo, KH * KW * Cin), jnp.bfloat16)],
        ),
        compiler_params=pltpu.CompilerParams(
            dimension_semantics=("parallel",)),
    )(x_tiles, w, b)

    out = out.reshape(N, Ho, Wo, Cout_pad)[:, :, :, :Cout]
    if stride != 1:
        out = out[:, ::stride, ::stride, :]
    # NHWC -> NCHW to match PyTorch output convention.
    return jnp.transpose(out, (0, 3, 1, 2))


def _reference(x_nchw, weight_oihw, bias, *, kernel_size, stride, upsample):
    """Pure-JAX reference (lax conv) for validation."""
    x = x_nchw
    if upsample:
        x = jnp.repeat(x, upsample, axis=2)
        x = jnp.repeat(x, upsample, axis=3)
    pad = kernel_size // 2
    x = jnp.pad(x, ((0, 0), (0, 0), (pad, pad), (pad, pad)), mode="reflect")
    out = jax.lax.conv_general_dilated(
        x, weight_oihw, window_strides=(stride, stride), padding="VALID",
        dimension_numbers=("NCHW", "OIHW", "NCHW"),
        precision=jax.lax.Precision.HIGHEST)
    return out + bias.reshape(1, -1, 1, 1)


if __name__ == "__main__":
    key = jax.random.PRNGKey(0)
    k_x, k_w, k_b = jax.random.split(key, 3)

    # --- Config 1: the module's main use case (upsampling decoder layer). ---
    # N=2, Cin=4, H=W=16, Cout=8, kernel=3, stride=1, upsample=2 -> out (2, 8, 32, 32).
    N, Cin, H, W = 2, 4, 16, 16
    Cout, K, stride, upsample = 8, 3, 1, 2
    x = jax.random.normal(k_x, (N, Cin, H, W), dtype=jnp.float32)
    weight = jax.random.normal(k_w, (Cout, Cin, K, K), dtype=jnp.float32) * 0.1
    bias = jax.random.normal(k_b, (Cout,), dtype=jnp.float32) * 0.1

    fn = jax.jit(functools.partial(upsample_conv_layer, kernel_size=K, stride=stride,
                                   upsample=upsample, tile_h=8))   # force 4 H-tiles per image
    out = jax.block_until_ready(fn(x, weight, bias))

    ref32 = _reference(x, weight, bias, kernel_size=K, stride=stride, upsample=upsample)
    # The kernel intentionally runs the matmul in bf16 (f32 accumulate); compare tightly
    # against a bf16-cast reference and loosely against the pure-f32 reference.
    refbf = _reference(x.astype(jnp.bfloat16).astype(jnp.float32),
                       weight.astype(jnp.bfloat16).astype(jnp.float32),
                       bias, kernel_size=K, stride=stride, upsample=upsample)
    assert out.shape == ref32.shape, (out.shape, ref32.shape)
    assert jnp.allclose(out, refbf, atol=5e-3, rtol=5e-3), (
        float(jnp.max(jnp.abs(out - refbf))))
    assert jnp.allclose(out, ref32, atol=6e-2, rtol=6e-2), (
        float(jnp.max(jnp.abs(out - ref32))))

    # --- Config 2: no upsample, stride 2, batch 1 (auto tile pick + strided path). ---
    k_x2, k_w2, k_b2 = jax.random.split(jax.random.PRNGKey(1), 3)
    x2 = jax.random.normal(k_x2, (1, 4, 16, 16), dtype=jnp.float32)
    w2 = jax.random.normal(k_w2, (8, 4, 3, 3), dtype=jnp.float32) * 0.1
    b2 = jax.random.normal(k_b2, (8,), dtype=jnp.float32) * 0.1
    fn2 = jax.jit(functools.partial(upsample_conv_layer, kernel_size=3, stride=2,
                                    upsample=None))
    out2 = jax.block_until_ready(fn2(x2, w2, b2))
    ref2 = _reference(x2.astype(jnp.bfloat16).astype(jnp.float32),
                      w2.astype(jnp.bfloat16).astype(jnp.float32),
                      b2, kernel_size=3, stride=2, upsample=None)
    assert out2.shape == ref2.shape, (out2.shape, ref2.shape)
    assert jnp.allclose(out2, ref2, atol=5e-3, rtol=5e-3), (
        float(jnp.max(jnp.abs(out2 - ref2))))

    print("KERNEL_OK")
</pallas_src>

<mosaic_0001>
module attributes {stable_mosaic.version = 11 : i64} {
  func.func @_conv_kernel(%arg0: i32, %arg1: memref<1x10x34x4xbf16, #tpu.memory_space<vmem>>, %arg2: memref<36x128xbf16, #tpu.memory_space<vmem>>, %arg3: memref<1x128xf32, #tpu.memory_space<vmem>>, %arg4: memref<1x8x32x128xf32, #tpu.memory_space<vmem>>, %arg5: memref<256x36xbf16, #tpu.memory_space<vmem>>) attributes {dimension_semantics = [#tpu.dimension_semantics<parallel>], iteration_bounds = array<i64: 8>, scalar_prefetch = 0 : i64, scratch_operands = 1 : i64, tpu.core_type = #tpu.core_type<tc>, window_params = [{transform_indices = @transform_0, window_bounds = array<i64: 1, 10, 34, 4>}, {pipeline_mode = #tpu.pipeline_mode<synchronous>, transform_indices = @transform_1, window_bounds = array<i64: 36, 128>}, {pipeline_mode = #tpu.pipeline_mode<synchronous>, transform_indices = @transform_2, window_bounds = array<i64: 1, 128>}, {transform_indices = @transform_3, window_bounds = array<i64: 1, 8, 32, 128>}]} {
    %c0 = arith.constant 0 : index
    %c0_0 = arith.constant 0 : index
    %c0_1 = arith.constant 0 : index
    %c0_2 = arith.constant 0 : index
    %0 = vector.load %arg1[%c0, %c0_0, %c0_1, %c0_2] : memref<1x10x34x4xbf16, #tpu.memory_space<vmem>>, vector<1x10x34x4xbf16>
    %1 = vector.shape_cast %0 : vector<1x10x34x4xbf16> to vector<10x34x4xbf16>
    %2 = vector.extract_strided_slice %1 {offsets = [0, 0, 0], sizes = [8, 32, 4], strides = [1, 1, 1]} : vector<10x34x4xbf16> to vector<8x32x4xbf16>
    %3 = vector.shape_cast %2 : vector<8x32x4xbf16> to vector<256x4xbf16>
    %c0_3 = arith.constant 0 : index
    %c0_4 = arith.constant 0 : index
    %4 = vector.load %arg5[%c0_3, %c0_4] : memref<256x36xbf16, #tpu.memory_space<vmem>>, vector<256x4xbf16>
    tpu.vector_store %arg5[%c0_3, %c0_4], %3 {strides = array<i32>} : memref<256x36xbf16, #tpu.memory_space<vmem>>, vector<256x4xbf16>,
    %5 = vector.extract_strided_slice %1 {offsets = [0, 1, 0], sizes = [8, 32, 4], strides = [1, 1, 1]} : vector<10x34x4xbf16> to vector<8x32x4xbf16>
    %6 = vector.shape_cast %5 : vector<8x32x4xbf16> to vector<256x4xbf16>
    %c0_5 = arith.constant 0 : index
    %c4 = arith.constant 4 : index
    %7 = vector.load %arg5[%c0_5, %c4] : memref<256x36xbf16, #tpu.memory_space<vmem>>, vector<256x4xbf16>
    tpu.vector_store %arg5[%c0_5, %c4], %6 {strides = array<i32>} : memref<256x36xbf16, #tpu.memory_space<vmem>>, vector<256x4xbf16>,
    %8 = vector.extract_strided_slice %1 {offsets = [0, 2, 0], sizes = [8, 32, 4], strides = [1, 1, 1]} : vector<10x34x4xbf16> to vector<8x32x4xbf16>
    %9 = vector.shape_cast %8 : vector<8x32x4xbf16> to vector<256x4xbf16>
    %c0_6 = arith.constant 0 : index
    %c8 = arith.constant 8 : index
    %10 = vector.load %arg5[%c0_6, %c8] : memref<256x36xbf16, #tpu.memory_space<vmem>>, vector<256x4xbf16>
    tpu.vector_store %arg5[%c0_6, %c8], %9 {strides = array<i32>} : memref<256x36xbf16, #tpu.memory_space<vmem>>, vector<256x4xbf16>,
    %11 = vector.extract_strided_slice %1 {offsets = [1, 0, 0], sizes = [8, 32, 4], strides = [1, 1, 1]} : vector<10x34x4xbf16> to vector<8x32x4xbf16>
    %12 = vector.shape_cast %11 : vector<8x32x4xbf16> to vector<256x4xbf16>
    %c0_7 = arith.constant 0 : index
    %c12 = arith.constant 12 : index
    %13 = vector.load %arg5[%c0_7, %c12] : memref<256x36xbf16, #tpu.memory_space<vmem>>, vector<256x4xbf16>
    tpu.vector_store %arg5[%c0_7, %c12], %12 {strides = array<i32>} : memref<256x36xbf16, #tpu.memory_space<vmem>>, vector<256x4xbf16>,
    %14 = vector.extract_strided_slice %1 {offsets = [1, 1, 0], sizes = [8, 32, 4], strides = [1, 1, 1]} : vector<10x34x4xbf16> to vector<8x32x4xbf16>
    %15 = vector.shape_cast %14 : vector<8x32x4xbf16> to vector<256x4xbf16>
    %c0_8 = arith.constant 0 : index
    %c16 = arith.constant 16 : index
    %16 = vector.load %arg5[%c0_8, %c16] : memref<256x36xbf16, #tpu.memory_space<vmem>>, vector<256x4xbf16>
    tpu.vector_store %arg5[%c0_8, %c16], %15 {strides = array<i32>} : memref<256x36xbf16, #tpu.memory_space<vmem>>, vector<256x4xbf16>,
    %17 = vector.extract_strided_slice %1 {offsets = [1, 2, 0], sizes = [8, 32, 4], strides = [1, 1, 1]} : vector<10x34x4xbf16> to vector<8x32x4xbf16>
    %18 = vector.shape_cast %17 : vector<8x32x4xbf16> to vector<256x4xbf16>
    %c0_9 = arith.constant 0 : index
    %c20 = arith.constant 20 : index
    %19 = vector.load %arg5[%c0_9, %c20] : memref<256x36xbf16, #tpu.memory_space<vmem>>, vector<256x4xbf16>
    tpu.vector_store %arg5[%c0_9, %c20], %18 {strides = array<i32>} : memref<256x36xbf16, #tpu.memory_space<vmem>>, vector<256x4xbf16>,
    %20 = vector.extract_strided_slice %1 {offsets = [2, 0, 0], sizes = [8, 32, 4], strides = [1, 1, 1]} : vector<10x34x4xbf16> to vector<8x32x4xbf16>
    %21 = vector.shape_cast %20 : vector<8x32x4xbf16> to vector<256x4xbf16>
    %c0_10 = arith.constant 0 : index
    %c24 = arith.constant 24 : index
    %22 = vector.load %arg5[%c0_10, %c24] : memref<256x36xbf16, #tpu.memory_space<vmem>>, vector<256x4xbf16>
    tpu.vector_store %arg5[%c0_10, %c24], %21 {strides = array<i32>} : memref<256x36xbf16, #tpu.memory_space<vmem>>, vector<256x4xbf16>,
    %23 = vector.extract_strided_slice %1 {offsets = [2, 1, 0], sizes = [8, 32, 4], strides = [1, 1, 1]} : vector<10x34x4xbf16> to vector<8x32x4xbf16>
    %24 = vector.shape_cast %23 : vector<8x32x4xbf16> to vector<256x4xbf16>
    %c0_11 = arith.constant 0 : index
    %c28 = arith.constant 28 : index
    %25 = vector.load %arg5[%c0_11, %c28] : memref<256x36xbf16, #tpu.memory_space<vmem>>, vector<256x4xbf16>
    tpu.vector_store %arg5[%c0_11, %c28], %24 {strides = array<i32>} : memref<256x36xbf16, #tpu.memory_space<vmem>>, vector<256x4xbf16>,
    %26 = vector.extract_strided_slice %1 {offsets = [2, 2, 0], sizes = [8, 32, 4], strides = [1, 1, 1]} : vector<10x34x4xbf16> to vector<8x32x4xbf16>
    %27 = vector.shape_cast %26 : vector<8x32x4xbf16> to vector<256x4xbf16>
    %c0_12 = arith.constant 0 : index
    %c32 = arith.constant 32 : index
    %28 = vector.load %arg5[%c0_12, %c32] : memref<256x36xbf16, #tpu.memory_space<vmem>>, vector<256x4xbf16>
    tpu.vector_store %arg5[%c0_12, %c32], %27 {strides = array<i32>} : memref<256x36xbf16, #tpu.memory_space<vmem>>, vector<256x4xbf16>,
    %c0_13 = arith.constant 0 : index
    %c0_14 = arith.constant 0 : index
    %29 = vector.load %arg5[%c0_13, %c0_14] : memref<256x36xbf16, #tpu.memory_space<vmem>>, vector<256x36xbf16>
    %c0_15 = arith.constant 0 : index
    %c0_16 = arith.constant 0 : index
    %30 = vector.load %arg2[%c0_15, %c0_16] : memref<36x128xbf16, #tpu.memory_space<vmem>>, vector<36x128xbf16>
    %cst = arith.constant dense<0.000000e+00> : vector<256x128xf32>
    %31 = tpu.matmul %29, %30, %cst {dimension_numbers = #tpu.dot_dimension_numbers<[1], [0], [0], [1], [0, 0, 1, 1], [], []>} : vector<256x36xbf16>, vector<36x128xbf16>, vector<256x128xf32> -> vector<256x128xf32>
    %c0_17 = arith.constant 0 : index
    %c0_18 = arith.constant 0 : index
    %32 = vector.load %arg3[%c0_17, %c0_18] : memref<1x128xf32, #tpu.memory_space<vmem>>, vector<1x128xf32>
    %33 = vector.broadcast %32 : vector<1x128xf32> to vector<256x128xf32>
    %34 = arith.addf %31, %33 : vector<256x128xf32>
    %35 = vector.shape_cast %34 : vector<256x128xf32> to vector<8x32x128xf32>
    %c0_19 = arith.constant 0 : index
    %c0_20 = arith.constant 0 : index
    %c0_21 = arith.constant 0 : index
    %c0_22 = arith.constant 0 : index
    %36 = vector.load %arg4[%c0_19, %c0_20, %c0_21, %c0_22] : memref<1x8x32x128xf32, #tpu.memory_space<vmem>>, vector<1x8x32x128xf32>
    %37 = vector.shape_cast %36 : vector<1x8x32x128xf32> to vector<8x32x128xf32>
    %38 = vector.shape_cast %35 : vector<8x32x128xf32> to vector<1x8x32x128xf32>
    tpu.vector_store %arg4[%c0_19, %c0_20, %c0_21, %c0_22], %38 {strides = array<i32>} : memref<1x8x32x128xf32, #tpu.memory_space<vmem>>, vector<1x8x32x128xf32>,
    return
  }
  func.func @transform_0(%arg0: i32) -> (i32, i32, i32, i32) {
    %c0_i32 = arith.constant 0 : i32
    %c0_i32_0 = arith.constant 0 : i32
    %c0_i32_1 = arith.constant 0 : i32
    %c0_i32_2 = arith.constant 0 : i32
    return %arg0, %c0_i32, %c0_i32_0, %c0_i32_1 : i32, i32, i32, i32
  }
  func.func @transform_1(%arg0: i32) -> (i32, i32) {
    %c0_i32 = arith.constant 0 : i32
    %c0_i32_0 = arith.constant 0 : i32
    %c0_i32_1 = arith.constant 0 : i32
    return %c0_i32, %c0_i32_0 : i32, i32
  }
  func.func @transform_2(%arg0: i32) -> (i32, i32) {
    %c0_i32 = arith.constant 0 : i32
    %c0_i32_0 = arith.constant 0 : i32
    %c0_i32_1 = arith.constant 0 : i32
    return %c0_i32, %c0_i32_0 : i32, i32
  }
  func.func @transform_3(%arg0: i32) -> (i32, i32, i32, i32) {
    %c0_i32 = arith.constant 0 : i32
    %c0_i32_0 = arith.constant 0 : i32
    %c0_i32_1 = arith.constant 0 : i32
    %c0_i32_2 = arith.constant 0 : i32
    return %arg0, %c0_i32, %c0_i32_0, %c0_i32_1 : i32, i32, i32, i32
  }
}

</mosaic_0001>

<llo_original>
// kernel: upsample_conv_layer.1
$region0: #{upsample_conv_layer.1}
  #allocation0 [shape = 'u32[]', space=smem, size = 0x4, offset = 0x4, fixed_abs, tag = 'smem constant byte address 0x4 - core index']
  #allocation1 [shape = 'u32[144,128]{1,0:T(1,128)}', space=vmem, size = 0x12000, scoped, tag = 'internal scratch']
  #allocation2 [shape = 'bf16[256,36]{1,0:T(16,128)(2,1)}', space=vmem, size = 0x10000, scoped, tag = 'scratch operand']
  %s0 = inlined_call_operand.vmem [shape: bf16[8,10,34,4], index: 0, kind: input, shape index: {}]
  %s1 = inlined_call_operand.vmem [shape: bf16[36,128], index: 1, kind: input, shape index: {}]
  %s2 = inlined_call_operand.vmem [shape: f32[1,128], index: 2, kind: input, shape index: {}]
  %s3 = inlined_call_operand.vmem [shape: f32[8,8,32,128], index: 3, kind: output, shape index: {}]
  %s4 = sld [smem:[#allocation0]]
  $region45: #{upsample_conv_layer.1} parent=0
    _
  %s6 = ssub.s32 1, %s4
  %s7 = scalar_select 0, %s6, %s4
  loop: start=0, step=1, limit=10
  $region2: #{upsample_conv_layer.1} parent=0 // loop_pre_header
    _
  $region3: #{upsample_conv_layer.1} parent=0 // loop_header
    %s9 = sphi 0, %s13
    %p10 = scmp.ge.s32.totalorder %s9, 10
    %s19 = sphi 0, %s21
    %s22 = sphi 0, %s19
    %s23 = sphi 0, %s22
    %s39 = sphi 0, %s23
    %s43 = sphi 0, %s43
    %s45 = sphi 0, %s43
    %s46 = sphi 0, %s45
    %s60 = sphi 0, %s46
    %s64 = sphi 0, %s64
    %s66 = sphi 0, %s64
    %s67 = sphi 0, %s66
    %s81 = sphi 0, %s67
    %s87 = sphi 0, %s89
    %s90 = sphi 0, %s87
    %s91 = sphi 0, %s90
    %s107 = sphi 0, %s91
  $region4: #{upsample_conv_layer.1} parent=0 // loop_header_branch
    %12 = sbr.rel (%p10) target = $region8
  $region5: #{upsample_conv_layer.1} parent=0 // loop_body
    %s14 = ssub.s32 %s9, 1
    %s15 = ssub.s32 %s9, 2
    %s16 = sadd.s32 %s9, 1
    %s17 = ssub.s32 %s9, %s16
    %p18 = scmp.eq.s32.totalorder %s17, 0
    %s20 = sadd.s32 %s19, 1
    %s21 = scalar_select %p18, %s19, %s20
    %p24 = pneg %p18
    %p25 = scmp.eq.s32.totalorder %s9, 7
    %p26 = por %p24, %p25
    %p27 = scmp.ne.s32.totalorder %s19, %s22
    %p28 = scmp.eq.s32.totalorder %s9, 0
    %p29 = por %p27, %p28
    %p30 = scmp.ne.s32.totalorder %s19, %s22
    %p31 = scmp.eq.s32.totalorder %s14, 7
    %p32 = por %p30, %p31
    %p33 = scmp.ne.s32.totalorder %s22, %s23
    %p34 = scmp.eq.s32.totalorder %s14, 0
    %p35 = por %p33, %p34
    %p36 = scmp.ne.s32.totalorder %s22, %s23
    %p37 = scmp.eq.s32.totalorder %s15, 7
    %p38 = por %p36, %p37
    %p40 = scmp.ne.s32.totalorder %s23, %s39
    %p41 = scmp.eq.s32.totalorder %s15, 0
    %p42 = por %p40, %p41
    %s44 = sadd.s32 %s43, 1
    %p47 = scmp.eq.s32.totalorder %s9, 7
    %p48 = scmp.ne.s32.totalorder %s43, %s45
    %p49 = scmp.eq.s32.totalorder %s9, 0
    %p50 = por %p48, %p49
    %p51 = scmp.ne.s32.totalorder %s43, %s45
    %p52 = scmp.eq.s32.totalorder %s14, 7
    %p53 = por %p51, %p52
    %p54 = scmp.ne.s32.totalorder %s45, %s46
    %p55 = scmp.eq.s32.totalorder %s14, 0
    %p56 = por %p54, %p55
    %p57 = scmp.ne.s32.totalorder %s45, %s46
    %p58 = scmp.eq.s32.totalorder %s15, 7
    %p59 = por %p57, %p58
    %p61 = scmp.ne.s32.totalorder %s46, %s60
    %p62 = scmp.eq.s32.totalorder %s15, 0
    %p63 = por %p61, %p62
    %s65 = sadd.s32 %s64, 1
    %p68 = scmp.eq.s32.totalorder %s9, 7
    %p69 = scmp.ne.s32.totalorder %s64, %s66
    %p70 = scmp.eq.s32.totalorder %s9, 0
    %p71 = por %p69, %p70
    %p72 = scmp.ne.s32.totalorder %s64, %s66
    %p73 = scmp.eq.s32.totalorder %s14, 7
    %p74 = por %p72, %p73
    %p75 = scmp.ne.s32.totalorder %s66, %s67
    %p76 = scmp.eq.s32.totalorder %s14, 0
    %p77 = por %p75, %p76
    %p78 = scmp.ne.s32.totalorder %s66, %s67
    %p79 = scmp.eq.s32.totalorder %s15, 7
    %p80 = por %p78, %p79
    %p82 = scmp.ne.s32.totalorder %s67, %s81
    %p83 = scmp.eq.s32.totalorder %s15, 0
    %p84 = por %p82, %p83
    %s85 = ssub.s32 %s9, %s16
    %p86 = scmp.eq.s32.totalorder %s85, 0
    %s88 = sadd.s32 %s87, 1
    %s89 = scalar_select %p86, %s87, %s88
    %p92 = pneg %p86
    %p93 = scmp.eq.s32.totalorder %s9, 7
    %p94 = por %p92, %p93
    %p95 = scmp.ne.s32.totalorder %s87, %s90
    %p96 = scmp.eq.s32.totalorder %s9, 0
    %p97 = por %p95, %p96
    %p98 = scmp.ne.s32.totalorder %s87, %s90
    %p99 = scmp.eq.s32.totalorder %s14, 7
    %p100 = por %p98, %p99
    %p101 = scmp.ne.s32.totalorder %s90, %s91
    %p102 = scmp.eq.s32.totalorder %s14, 0
    %p103 = por %p101, %p102
    %p104 = scmp.ne.s32.totalorder %s90, %s91
    %p105 = scmp.eq.s32.totalorder %s15, 7
    %p106 = por %p104, %p105
    %p108 = scmp.ne.s32.totalorder %s91, %s107
    %p109 = scmp.eq.s32.totalorder %s15, 0
    %p110 = por %p108, %p109
    %p111 = scmp.le.s32.totalorder 1, %s9
    %p112 = scmp.lt.s32.totalorder %s9, 9
    %p113 = pnand %p111, %p112
    %p114 = pneg %p113
    // Predicated region
    $region9: #{upsample_conv_layer.1} parent=5 // pred_check
      _
    $region10: #{upsample_conv_layer.1} parent=5 // pred_check_branch
      %116 = sbr.rel (%p113) target = $region12
    $region11: #{upsample_conv_layer.1} parent=5 // pred_region
      %s117 = ssub.s32 %s9, 1
      // Predicated region
      $region13: #{upsample_conv_layer.1} parent=11 // pred_check
        %p118 = pneg %p56
      $region14: #{upsample_conv_layer.1} parent=11 // pred_check_branch
        %120 = sbr.rel (%p118) target = $region16
      $region15: #{upsample_conv_layer.1} parent=11 // pred_region
        _
      $region16: #{upsample_conv_layer.1} parent=11 // pred_fallthru
        _
      // Predicated region
      $region17: #{upsample_conv_layer.1} parent=11 // pred_check
        %p121 = pneg %p77
      $region18: #{upsample_conv_layer.1} parent=11 // pred_check_branch
        %123 = sbr.rel (%p121) target = $region20
      $region19: #{upsample_conv_layer.1} parent=11 // pred_region
        _
      $region20: #{upsample_conv_layer.1} parent=11 // pred_fallthru
        _
    $region12: #{upsample_conv_layer.1} parent=5 // pred_fallthru
      _
    %p124 = scmp.lt.s32.totalorder %s9, 8
    // Predicated region
    $region21: #{upsample_conv_layer.1} parent=5 // pred_check
      %p125 = pneg %p124
    $region22: #{upsample_conv_layer.1} parent=5 // pred_check_branch
      %127 = sbr.rel (%p125) target = $region24
    $region23: #{upsample_conv_layer.1} parent=5 // pred_region
      // Predicated region
      $region25: #{upsample_conv_layer.1} parent=23 // pred_check
        %p128 = pneg %p29
      $region26: #{upsample_conv_layer.1} parent=23 // pred_check_branch
        %130 = sbr.rel (%p128) target = $region28
      $region27: #{upsample_conv_layer.1} parent=23 // pred_region
        %p131 = scmp.lt.s32.totalorder %s9, 7
        %s132 = scalar_select %p131, %s9, 7
        %s133 = smul.addr %s132, 50
        %s134 = smul.addr %s133, 4
        %s135 = scalar_lea.vmem %s0, %s134
      $region28: #{upsample_conv_layer.1} parent=23 // pred_fallthru
        _
    $region24: #{upsample_conv_layer.1} parent=5 // pred_fallthru
      _
    %p136 = scmp.le.s32.totalorder 1, %s9
    %p137 = scmp.lt.s32.totalorder %s9, 9
    %p138 = pnand %p136, %p137
    %p139 = pneg %p138
    // Predicated region
    $region29: #{upsample_conv_layer.1} parent=5 // pred_check
      _
    $region30: #{upsample_conv_layer.1} parent=5 // pred_check_branch
      %141 = sbr.rel (%p138) target = $region32
    $region31: #{upsample_conv_layer.1} parent=5 // pred_region
      %s142 = ssub.s32 %s9, 1
      %p143 = scmp.lt.s32.totalorder %s14, 7
      %s144 = scalar_select %p143, %s14, 7
      %s145 = smul.addr %s144, 50
      %s146 = smul.addr %s145, 4
      %s147 = scalar_lea.vmem %s0, %s146
      %p148 = pneg %p35
      %p149 = pneg %p32
      %p150 = pneg %p56
      %p151 = pneg %p53
      %p152 = pneg %p77
      %p153 = pneg %p74
      %p154 = pneg %p103
      %p155 = pneg %p100
      %p156 = scmp.lt.s32.totalorder %s14, 7
      %s157 = scalar_select %p156, %s14, 7
      %s158 = smul.addr %s157, 32
      %s159 = smul.addr %s158, 8
      %s160 = scalar_lea.vmem %s3, %s159
      %p161 = scmp.lt.s32.totalorder %s14, 7
      %s162 = scalar_select %p161, %s14, 7
      %s163 = smul.addr %s162, 50
      %s164 = smul.addr %s163, 4
      %s165 = scalar_lea.vmem %s0, %s164
      %p166 = scmp.lt.s32.totalorder %s14, 7
      %s167 = scalar_select %p166, %s14, 7
      %s168 = smul.addr %s167, 32
      %s169 = smul.addr %s168, 8
      %s170 = scalar_lea.vmem %s3, %s169
      %v172 = vld [vmem:[%s165] sm:$0xf]
      %v173 = vld [vmem:[%s165 + $0x4] sm:$0xf]
      %v174 = vld [vmem:[%s165 + $0x8] sm:$0xf]
      %v175 = vld [vmem:[%s165 + $0xc] sm:$0xf]
      %v176 = vld [vmem:[%s165 + $0x10] sm:$0x1]
      %v177 = vld [vmem:[%s165 + $0x14] sm:$0xf]
      %v178 = vld [vmem:[%s165 + $0x18] sm:$0xf]
      %v179 = vld [vmem:[%s165 + $0x1c] sm:$0xf]
      %v180 = vld [vmem:[%s165 + $0x20] sm:$0xf]
      %v181 = vld [vmem:[%s165 + $0x24] sm:$0x1]
      %v182 = vld [vmem:[%s165 + $0x28] sm:$0xf]
      %v183 = vld [vmem:[%s165 + $0x2c] sm:$0xf]
      %v184 = vld [vmem:[%s165 + $0x30] sm:$0xf]
      %v185 = vld [vmem:[%s165 + $0x34] sm:$0xf]
      %v186 = vld [vmem:[%s165 + $0x38] sm:$0x1]
      %v187 = vld [vmem:[%s165 + $0x3c] sm:$0xf]
      %v188 = vld [vmem:[%s165 + $0x40] sm:$0xf]
      %v189 = vld [vmem:[%s165 + $0x44] sm:$0xf]
      %v190 = vld [vmem:[%s165 + $0x48] sm:$0xf]
      %v191 = vld [vmem:[%s165 + $0x4c] sm:$0x1]
      %v192 = vld [vmem:[%s165 + $0x50] sm:$0xf]
      %v193 = vld [vmem:[%s165 + $0x54] sm:$0xf]
      %v194 = vld [vmem:[%s165 + $0x58] sm:$0xf]
      %v195 = vld [vmem:[%s165 + $0x5c] sm:$0xf]
      %v196 = vld [vmem:[%s165 + $0x60] sm:$0x1]
      %v197 = vld [vmem:[%s165 + $0x64] sm:$0xf]
      %v198 = vld [vmem:[%s165 + $0x68] sm:$0xf]
      %v199 = vld [vmem:[%s165 + $0x6c] sm:$0xf]
      %v200 = vld [vmem:[%s165 + $0x70] sm:$0xf]
      %v201 = vld [vmem:[%s165 + $0x74] sm:$0x1]
      %v202 = vld [vmem:[%s165 + $0x78] sm:$0xf]
      %v203 = vld [vmem:[%s165 + $0x7c] sm:$0xf]
      %v204 = vld [vmem:[%s165 + $0x80] sm:$0xf]
      %v205 = vld [vmem:[%s165 + $0x84] sm:$0xf]
      %v206 = vld [vmem:[%s165 + $0x88] sm:$0x1]
      %v207 = vld [vmem:[%s165 + $0x8c] sm:$0xf]
      %v208 = vld [vmem:[%s165 + $0x90] sm:$0xf]
      %v209 = vld [vmem:[%s165 + $0x94] sm:$0xf]
      %v210 = vld [vmem:[%s165 + $0x98] sm:$0xf]
      %v211 = vld [vmem:[%s165 + $0x9c] sm:$0x1]
      %v212 = vld [vmem:[%s165 + $0xa0] sm:$0xf]
      %v213 = vld [vmem:[%s165 + $0xa4] sm:$0xf]
      %v214 = vld [vmem:[%s165 + $0xa8] sm:$0xf]
      %v215 = vld [vmem:[%s165 + $0xac] sm:$0xf]
      %v216 = vld [vmem:[%s165 + $0xb0] sm:$0x1]
      %v217 = vld [vmem:[%s165 + $0xb4] sm:$0xf]
      %v218 = vld [vmem:[%s165 + $0xb8] sm:$0xf]
      %v219 = vld [vmem:[%s165 + $0xbc] sm:$0xf]
      %v220 = vld [vmem:[%s165 + $0xc0] sm:$0xf]
      %v221 = vld [vmem:[%s165 + $0xc4] sm:$0x1]
      %v254 = vunpack.c.l.b16 %v172
      %v255 = vunpack.c.l.b16 %v173
      %v256 = vunpack.c.l.b16 %v174
      %v257 = vunpack.c.l.b16 %v175
      %v258 = vunpack.c.l.b16 %v177
      %v259 = vunpack.c.l.b16 %v178
      %v260 = vunpack.c.l.b16 %v179
      %v261 = vunpack.c.l.b16 %v180
      %v262 = vunpack.c.l.b16 %v182
      %v263 = vunpack.c.l.b16 %v183
      %v264 = vunpack.c.l.b16 %v184
      %v265 = vunpack.c.l.b16 %v185
      %v266 = vunpack.c.l.b16 %v187
      %v267 = vunpack.c.l.b16 %v188
      %v268 = vunpack.c.l.b16 %v189
      %v269 = vunpack.c.l.b16 %v190
      %v270 = vunpack.c.l.b16 %v192
      %v271 = vunpack.c.l.b16 %v193
      %v272 = vunpack.c.l.b16 %v194
      %v273 = vunpack.c.l.b16 %v195
      %v274 = vunpack.c.l.b16 %v197
      %v275 = vunpack.c.l.b16 %v198
      %v276 = vunpack.c.l.b16 %v199
      %v277 = vunpack.c.l.b16 %v200
      %v278 = vunpack.c.l.b16 %v202
      %v279 = vunpack.c.l.b16 %v203
      %v280 = vunpack.c.l.b16 %v204
      %v281 = vunpack.c.l.b16 %v205
      %v282 = vunpack.c.l.b16 %v207
      %v283 = vunpack.c.l.b16 %v208
      %v284 = vunpack.c.l.b16 %v209
      %v285 = vunpack.c.l.b16 %v210
      %v286 = vpack.c.b16 %v255, %v254
      %v287 = vpack.c.b16 %v257, %v256
      %v288 = vpack.c.b16 %v259, %v258
      %v289 = vpack.c.b16 %v261, %v260
      %v290 = vpack.c.b16 %v263, %v262
      %v291 = vpack.c.b16 %v265, %v264
      %v292 = vpack.c.b16 %v267, %v266
      %v293 = vpack.c.b16 %v269, %v268
      %v294 = vpack.c.b16 %v271, %v270
      %v295 = vpack.c.b16 %v273, %v272
      %v296 = vpack.c.b16 %v275, %v274
      %v297 = vpack.c.b16 %v277, %v276
      %v298 = vpack.c.b16 %v279, %v278
      %v299 = vpack.c.b16 %v281, %v280
      %v300 = vpack.c.b16 %v283, %v282
      %v301 = vpack.c.b16 %v285, %v284
      %vm318 = vcmask 31744
      %319 = vst.msk [vmem:[#allocation2] sm:$0xff] %vm318, %v286
      %320 = vst.msk [vmem:[#allocation2 + $0x8] sm:$0xff] %vm318, %v287
      %321 = vst.msk [vmem:[#allocation2 + $0x10] sm:$0xff] %vm318, %v288
      %322 = vst.msk [vmem:[#allocation2 + $0x18] sm:$0xff] %vm318, %v289
      %323 = vst.msk [vmem:[#allocation2 + $0x20] sm:$0xff] %vm318, %v290
      %324 = vst.msk [vmem:[#allocation2 + $0x28] sm:$0xff] %vm318, %v291
      %325 = vst.msk [vmem:[#allocation2 + $0x30] sm:$0xff] %vm318, %v292
      %326 = vst.msk [vmem:[#allocation2 + $0x38] sm:$0xff] %vm318, %v293
      %327 = vst.msk [vmem:[#allocation2 + $0x40] sm:$0xff] %vm318, %v294
      %328 = vst.msk [vmem:[#allocation2 + $0x48] sm:$0xff] %vm318, %v295
      %329 = vst.msk [vmem:[#allocation2 + $0x50] sm:$0xff] %vm318, %v296
      %330 = vst.msk [vmem:[#allocation2 + $0x58] sm:$0xff] %vm318, %v297
      %331 = vst.msk [vmem:[#allocation2 + $0x60] sm:$0xff] %vm318, %v298
      %332 = vst.msk [vmem:[#allocation2 + $0x68] sm:$0xff] %vm318, %v299
      %333 = vst.msk [vmem:[#allocation2 + $0x70] sm:$0xff] %vm318, %v300
      %334 = vst.msk [vmem:[#allocation2 + $0x78] sm:$0xff] %vm318, %v301
      %vm335 = vsmask.f32 3328
      %vm336 = vsmask.f32 7440
      %vm337 = vmor %vm335, %vm336
      %v339 = vshrl.u32 %v172, 16
      %v341 = vrot.slane %v339, 4
      %v342 = vshll.u32 %v172, 16
      %v344 = vrot.slane %v342, 5
      %v345 = vor.u32 %v341, %v344
      %v346 = vrot.slane %v345, 4
      %v348 = vshll.u32 %v173, 16
      %v350 = vrot.slane %v348, 5
      %v351 = vsel %vm337, %v346, %v350
      %v352 = vshrl.u32 %v173, 16
      %v354 = vrot.slane %v352, 4
      %v355 = vor.u32 %v354, %v350
      %v356 = vrot.slane %v355, 4
      %v358 = vshll.u32 %v174, 16
      %v360 = vrot.slane %v358, 5
      %v361 = vsel %vm337, %v356, %v360
      %v362 = vshrl.u32 %v174, 16
      %v364 = vrot.slane %v362, 4
      %v365 = vor.u32 %v364, %v360
      %v366 = vrot.slane %v365, 4
      %v368 = vshll.u32 %v175, 16
      %v370 = vrot.slane %v368, 5
      %v371 = vsel %vm337, %v366, %v370
      %v372 = vshrl.u32 %v175, 16
      %v374 = vrot.slane %v372, 4
      %v375 = vor.u32 %v374, %v370
      %v376 = vrot.slane %v375, 4
      %v378 = vshll.u32 %v176, 16
      %v380 = vrot.slane %v378, 5
      %v381 = vsel %vm337, %v376, %v380
      %v383 = vshrl.u32 %v177, 16
      %v385 = vrot.slane %v383, 4
      %v386 = vshll.u32 %v177, 16
      %v388 = vrot.slane %v386, 5
      %v389 = vor.u32 %v385, %v388
      %v390 = vrot.slane %v389, 4
      %v392 = vshll.u32 %v178, 16
      %v394 = vrot.slane %v392, 5
      %v395 = vsel %vm337, %v390, %v394
      %v396 = vshrl.u32 %v178, 16
      %v398 = vrot.slane %v396, 4
      %v399 = vor.u32 %v398, %v394
      %v400 = vrot.slane %v399, 4
      %v402 = vshll.u32 %v179, 16
      %v404 = vrot.slane %v402, 5
      %v405 = vsel %vm337, %v400, %v404
      %v406 = vshrl.u32 %v179, 16
      %v408 = vrot.slane %v406, 4
      %v409 = vor.u32 %v408, %v404
      %v410 = vrot.slane %v409, 4
      %v412 = vshll.u32 %v180, 16
      %v414 = vrot.slane %v412, 5
      %v415 = vsel %vm337, %v410, %v414
      %v416 = vshrl.u32 %v180, 16
      %v418 = vrot.slane %v416, 4
      %v419 = vor.u32 %v418, %v414
      %v420 = vrot.slane %v419, 4
      %v422 = vshll.u32 %v181, 16
      %v424 = vrot.slane %v422, 5
      %v425 = vsel %vm337, %v420, %v424
      %v427 = vshrl.u32 %v182, 16
      %v429 = vrot.slane %v427, 4
      %v430 = vshll.u32 %v182, 16
      %v432 = vrot.slane %v430, 5
      %v433 = vor.u32 %v429, %v432
      %v434 = vrot.slane %v433, 4
      %v436 = vshll.u32 %v183, 16
      %v438 = vrot.slane %v436, 5
      %v439 = vsel %vm337, %v434, %v438
      %v440 = vshrl.u32 %v183, 16
      %v442 = vrot.slane %v440, 4
      %v443 = vor.u32 %v442, %v438
      %v444 = vrot.slane %v443, 4
      %v446 = vshll.u32 %v184, 16
      %v448 = vrot.slane %v446, 5
      %v449 = vsel %vm337, %v444, %v448
      %v450 = vshrl.u32 %v184, 16
      %v452 = vrot.slane %v450, 4
      %v453 = vor.u32 %v452, %v448
      %v454 = vrot.slane %v453, 4
      %v456 = vshll.u32 %v185, 16
      %v458 = vrot.slane %v456, 5
      %v459 = vsel %vm337, %v454, %v458
      %v460 = vshrl.u32 %v185, 16
      %v462 = vrot.slane %v460, 4
      %v463 = vor.u32 %v462, %v458
      %v464 = vrot.slane %v463, 4
      %v466 = vshll.u32 %v186, 16
      %v468 = vrot.slane %v466, 5
      %v469 = vsel %vm337, %v464, %v468
      %v471 = vshrl.u32 %v187, 16
      %v473 = vrot.slane %v471, 4
      %v474 = vshll.u32 %v187, 16
      %v476 = vrot.slane %v474, 5
      %v477 = vor.u32 %v473, %v476
      %v478 = vrot.slane %v477, 4
      %v480 = vshll.u32 %v188, 16
      %v482 = vrot.slane %v480, 5
      %v483 = vsel %vm337, %v478, %v482
      %v484 = vshrl.u32 %v188, 16
      %v486 = vrot.slane %v484, 4
      %v487 = vor.u32 %v486, %v482
      %v488 = vrot.slane %v487, 4
      %v490 = vshll.u32 %v189, 16
      %v492 = vrot.slane %v490, 5
      %v493 = vsel %vm337, %v488, %v492
      %v494 = vshrl.u32 %v189, 16
      %v496 = vrot.slane %v494, 4
      %v497 = vor.u32 %v496, %v492
      %v498 = vrot.slane %v497, 4
      %v500 = vshll.u32 %v190, 16
      %v502 = vrot.slane %v500, 5
      %v503 = vsel %vm337, %v498, %v502
      %v504 = vshrl.u32 %v190, 16
      %v506 = vrot.slane %v504, 4
      %v507 = vor.u32 %v506, %v502
      %v508 = vrot.slane %v507, 4
      %v510 = vshll.u32 %v191, 16
      %v512 = vrot.slane %v510, 5
      %v513 = vsel %vm337, %v508, %v512
      %v515 = vshrl.u32 %v192, 16
      %v517 = vrot.slane %v515, 4
      %v518 = vshll.u32 %v192, 16
      %v520 = vrot.slane %v518, 5
      %v521 = vor.u32 %v517, %v520
      %v522 = vrot.slane %v521, 4
      %v524 = vshll.u32 %v193, 16
      %v526 = vrot.slane %v524, 5
      %v527 = vsel %vm337, %v522, %v526
      %v528 = vshrl.u32 %v193, 16
      %v530 = vrot.slane %v528, 4
      %v531 = vor.u32 %v530, %v526
      %v532 = vrot.slane %v531, 4
      %v534 = vshll.u32 %v194, 16
      %v536 = vrot.slane %v534, 5
      %v537 = vsel %vm337, %v532, %v536
      %v538 = vshrl.u32 %v194, 16
      %v540 = vrot.slane %v538, 4
      %v541 = vor.u32 %v540, %v536
      %v542 = vrot.slane %v541, 4
      %v544 = vshll.u32 %v195, 16
      %v546 = vrot.slane %v544, 5
      %v547 = vsel %vm337, %v542, %v546
      %v548 = vshrl.u32 %v195, 16
      %v550 = vrot.slane %v548, 4
      %v551 = vor.u32 %v550, %v546
      %v552 = vrot.slane %v551, 4
      %v554 = vshll.u32 %v196, 16
      %v556 = vrot.slane %v554, 5
      %v557 = vsel %vm337, %v552, %v556
      %v559 = vshrl.u32 %v197, 16
      %v561 = vrot.slane %v559, 4
      %v562 = vshll.u32 %v197, 16
      %v564 = vrot.slane %v562, 5
      %v565 = vor.u32 %v561, %v564
      %v566 = vrot.slane %v565, 4
      %v568 = vshll.u32 %v198, 16
      %v570 = vrot.slane %v568, 5
      %v571 = vsel %vm337, %v566, %v570
      %v572 = vshrl.u32 %v198, 16
      %v574 = vrot.slane %v572, 4
      %v575 = vor.u32 %v574, %v570
      %v576 = vrot.slane %v575, 4
      %v578 = vshll.u32 %v199, 16
      %v580 = vrot.slane %v578, 5
      %v581 = vsel %vm337, %v576, %v580
      %v582 = vshrl.u32 %v199, 16
      %v584 = vrot.slane %v582, 4
      %v585 = vor.u32 %v584, %v580
      %v586 = vrot.slane %v585, 4
      %v588 = vshll.u32 %v200, 16
      %v590 = vrot.slane %v588, 5
      %v591 = vsel %vm337, %v586, %v590
      %v592 = vshrl.u32 %v200, 16
      %v594 = vrot.slane %v592, 4
      %v595 = vor.u32 %v594, %v590
      %v596 = vrot.slane %v595, 4
      %v598 = vshll.u32 %v201, 16
      %v600 = vrot.slane %v598, 5
      %v601 = vsel %vm337, %v596, %v600
      %v603 = vshrl.u32 %v202, 16
      %v605 = vrot.slane %v603, 4
      %v606 = vshll.u32 %v202, 16
      %v608 = vrot.slane %v606, 5
      %v609 = vor.u32 %v605, %v608
      %v610 = vrot.slane %v609, 4
      %v612 = vshll.u32 %v203, 16
      %v614 = vrot.slane %v612, 5
      %v615 = vsel %vm337, %v610, %v614
      %v616 = vshrl.u32 %v203, 16
      %v618 = vrot.slane %v616, 4
      %v619 = vor.u32 %v618, %v614
      %v620 = vrot.slane %v619, 4
      %v622 = vshll.u32 %v204, 16
      %v624 = vrot.slane %v622, 5
      %v625 = vsel %vm337, %v620, %v624
      %v626 = vshrl.u32 %v204, 16
      %v628 = vrot.slane %v626, 4
      %v629 = vor.u32 %v628, %v624
      %v630 = vrot.slane %v629, 4
      %v632 = vshll.u32 %v205, 16
      %v634 = vrot.slane %v632, 5
      %v635 = vsel %vm337, %v630, %v634
      %v636 = vshrl.u32 %v205, 16
      %v638 = vrot.slane %v636, 4
      %v639 = vor.u32 %v638, %v634
      %v640 = vrot.slane %v639, 4
      %v642 = vshll.u32 %v206, 16
      %v644 = vrot.slane %v642, 5
      %v645 = vsel %vm337, %v640, %v644
      %v647 = vshrl.u32 %v207, 16
      %v649 = vrot.slane %v647, 4
      %v650 = vshll.u32 %v207, 16
      %v652 = vrot.slane %v650, 5
      %v653 = vor.u32 %v649, %v652
      %v654 = vrot.slane %v653, 4
      %v656 = vshll.u32 %v208, 16
      %v658 = vrot.slane %v656, 5
      %v659 = vsel %vm337, %v654, %v658
      %v660 = vshrl.u32 %v208, 16
      %v662 = vrot.slane %v660, 4
      %v663 = vor.u32 %v662, %v658
      %v664 = vrot.slane %v663, 4
      %v666 = vshll.u32 %v209, 16
      %v668 = vrot.slane %v666, 5
      %v669 = vsel %vm337, %v664, %v668
      %v670 = vshrl.u32 %v209, 16
      %v672 = vrot.slane %v670, 4
      %v673 = vor.u32 %v672, %v668
      %v674 = vrot.slane %v673, 4
      %v676 = vshll.u32 %v210, 16
      %v678 = vrot.slane %v676, 5
      %v679 = vsel %vm337, %v674, %v678
      %v680 = vshrl.u32 %v210, 16
      %v682 = vrot.slane %v680, 4
      %v683 = vor.u32 %v682, %v678
      %v684 = vrot.slane %v683, 4
      %v686 = vshll.u32 %v211, 16
      %v688 = vrot.slane %v686, 5
      %v689 = vsel %vm337, %v684, %v688
      %v690 = vunpack.c.l.b16 %v351
      %v691 = vunpack.c.l.b16 %v361
      %v692 = vunpack.c.l.b16 %v371
      %v693 = vunpack.c.l.b16 %v381
      %v694 = vunpack.c.l.b16 %v395
      %v695 = vunpack.c.l.b16 %v405
      %v696 = vunpack.c.l.b16 %v415
      %v697 = vunpack.c.l.b16 %v425
      %v698 = vunpack.c.l.b16 %v439
      %v699 = vunpack.c.l.b16 %v449
      %v700 = vunpack.c.l.b16 %v459
      %v701 = vunpack.c.l.b16 %v469
      %v702 = vunpack.c.l.b16 %v483
      %v703 = vunpack.c.l.b16 %v493
      %v704 = vunpack.c.l.b16 %v503
      %v705 = vunpack.c.l.b16 %v513
      %v706 = vunpack.c.l.b16 %v527
      %v707 = vunpack.c.l.b16 %v537
      %v708 = vunpack.c.l.b16 %v547
      %v709 = vunpack.c.l.b16 %v557
      %v710 = vunpack.c.l.b16 %v571
      %v711 = vunpack.c.l.b16 %v581
      %v712 = vunpack.c.l.b16 %v591
      %v713 = vunpack.c.l.b16 %v601
      %v714 = vunpack.c.l.b16 %v615
      %v715 = vunpack.c.l.b16 %v625
      %v716 = vunpack.c.l.b16 %v635
      %v717 = vunpack.c.l.b16 %v645
      %v718 = vunpack.c.l.b16 %v659
      %v719 = vunpack.c.l.b16 %v669
      %v720 = vunpack.c.l.b16 %v679
      %v721 = vunpack.c.l.b16 %v689
      %v722 = vpack.c.b16 %v691, %v690
      %v723 = vpack.c.b16 %v693, %v692
      %v724 = vpack.c.b16 %v695, %v694
      %v725 = vpack.c.b16 %v697, %v696
      %v726 = vpack.c.b16 %v699, %v698
      %v727 = vpack.c.b16 %v701, %v700
      %v728 = vpack.c.b16 %v703, %v702
      %v729 = vpack.c.b16 %v705, %v704
      %v730 = vpack.c.b16 %v707, %v706
      %v731 = vpack.c.b16 %v709, %v708
      %v732 = vpack.c.b16 %v711, %v710
      %v733 = vpack.c.b16 %v713, %v712
      %v734 = vpack.c.b16 %v715, %v714
      %v735 = vpack.c.b16 %v717, %v716
      %v736 = vpack.c.b16 %v719, %v718
      %v737 = vpack.c.b16 %v721, %v720
      %738 = vrot.lane.b32.xlu0 %v722, 4
      %v739 = vpop.permute.xlu0 %738
      %740 = vrot.lane.b32.xlu0 %v723, 4
      %v741 = vpop.permute.xlu0 %740
      %742 = vrot.lane.b32.xlu0 %v724, 4
      %v743 = vpop.permute.xlu0 %742
      %744 = vrot.lane.b32.xlu0 %v725, 4
      %v745 = vpop.permute.xlu0 %744
      %746 = vrot.lane.b32.xlu0 %v726, 4
      %v747 = vpop.permute.xlu0 %746
      %748 = vrot.lane.b32.xlu0 %v727, 4
      %v749 = vpop.permute.xlu0 %748
      %750 = vrot.lane.b32.xlu0 %v728, 4
      %v751 = vpop.permute.xlu0 %750
      %752 = vrot.lane.b32.xlu0 %v729, 4
      %v753 = vpop.permute.xlu0 %752
      %754 = vrot.lane.b32.xlu0 %v730, 4
      %v755 = vpop.permute.xlu0 %754
      %756 = vrot.lane.b32.xlu0 %v731, 4
      %v757 = vpop.permute.xlu0 %756
      %758 = vrot.lane.b32.xlu0 %v732, 4
      %v759 = vpop.permute.xlu0 %758
      %760 = vrot.lane.b32.xlu0 %v733, 4
      %v761 = vpop.permute.xlu0 %760
      %762 = vrot.lane.b32.xlu0 %v734, 4
      %v763 = vpop.permute.xlu0 %762
      %764 = vrot.lane.b32.xlu0 %v735, 4
      %v765 = vpop.permute.xlu0 %764
      %766 = vrot.lane.b32.xlu0 %v736, 4
      %v767 = vpop.permute.xlu0 %766
      %768 = vrot.lane.b32.xlu0 %v737, 4
      %v769 = vpop.permute.xlu0 %768
      %vm786 = vcmask 64544
      %787 = vst.msk [vmem:[#allocation2] sm:$0xff] %vm786, %v739
      %788 = vst.msk [vmem:[#allocation2 + $0x8] sm:$0xff] %vm786, %v741
      %789 = vst.msk [vmem:[#allocation2 + $0x10] sm:$0xff] %vm786, %v743
      %790 = vst.msk [vmem:[#allocation2 + $0x18] sm:$0xff] %vm786, %v745
      %791 = vst.msk [vmem:[#allocation2 + $0x20] sm:$0xff] %vm786, %v747
      %792 = vst.msk [vmem:[#allocation2 + $0x28] sm:$0xff] %vm786, %v749
      %793 = vst.msk [vmem:[#allocation2 + $0x30] sm:$0xff] %vm786, %v751
      %794 = vst.msk [vmem:[#allocation2 + $0x38] sm:$0xff] %vm786, %v753
      %795 = vst.msk [vmem:[#allocation2 + $0x40] sm:$0xff] %vm786, %v755
      %796 = vst.msk [vmem:[#allocation2 + $0x48] sm:$0xff] %vm786, %v757
      %797 = vst.msk [vmem:[#allocation2 + $0x50] sm:$0xff] %vm786, %v759
      %798 = vst.msk [vmem:[#allocation2 + $0x58] sm:$0xff] %vm786, %v761
      %799 = vst.msk [vmem:[#allocation2 + $0x60] sm:$0xff] %vm786, %v763
      %800 = vst.msk [vmem:[#allocation2 + $0x68] sm:$0xff] %vm786, %v765
      %801 = vst.msk [vmem:[#allocation2 + $0x70] sm:$0xff] %vm786, %v767
      %802 = vst.msk [vmem:[#allocation2 + $0x78] sm:$0xff] %vm786, %v769
      %vm811 = vcmask 1042432
      %vm812 = vcmask 1046532
      %vm813 = vmor %vm811, %vm812
      %v814 = vrot.slane %v172, 5
      %v815 = vrot.slane %v814, 4
      %v816 = vrot.slane %v173, 5
      %v817 = vsel %vm813, %v815, %v816
      %v818 = vrot.slane %v816, 4
      %v819 = vrot.slane %v174, 5
      %v820 = vsel %vm813, %v818, %v819
      %v821 = vrot.slane %v819, 4
      %v822 = vrot.slane %v175, 5
      %v823 = vsel %vm813, %v821, %v822
      %v824 = vrot.slane %v822, 4
      %v825 = vrot.slane %v176, 5
      %v826 = vsel %vm813, %v824, %v825
      %v827 = vrot.slane %v177, 5
      %v828 = vrot.slane %v827, 4
      %v829 = vrot.slane %v178, 5
      %v830 = vsel %vm813, %v828, %v829
      %v831 = vrot.slane %v829, 4
      %v832 = vrot.slane %v179, 5
      %v833 = vsel %vm813, %v831, %v832
      %v834 = vrot.slane %v832, 4
      %v835 = vrot.slane %v180, 5
      %v836 = vsel %vm813, %v834, %v835
      %v837 = vrot.slane %v835, 4
      %v838 = vrot.slane %v181, 5
      %v839 = vsel %vm813, %v837, %v838
      %v840 = vrot.slane %v182, 5
      %v841 = vrot.slane %v840, 4
      %v842 = vrot.slane %v183, 5
      %v843 = vsel %vm813, %v841, %v842
      %v844 = vrot.slane %v842, 4
      %v845 = vrot.slane %v184, 5
      %v846 = vsel %vm813, %v844, %v845
      %v847 = vrot.slane %v845, 4
      %v848 = vrot.slane %v185, 5
      %v849 = vsel %vm813, %v847, %v848
      %v850 = vrot.slane %v848, 4
      %v851 = vrot.slane %v186, 5
      %v852 = vsel %vm813, %v850, %v851
      %v853 = vrot.slane %v187, 5
      %v854 = vrot.slane %v853, 4
      %v855 = vrot.slane %v188, 5
      %v856 = vsel %vm813, %v854, %v855
      %v857 = vrot.slane %v855, 4
      %v858 = vrot.slane %v189, 5
      %v859 = vsel %vm813, %v857, %v858
      %v860 = vrot.slane %v858, 4
      %v861 = vrot.slane %v190, 5
      %v862 = vsel %vm813, %v860, %v861
      %v863 = vrot.slane %v861, 4
      %v864 = vrot.slane %v191, 5
      %v865 = vsel %vm813, %v863, %v864
      %v866 = vrot.slane %v192, 5
      %v867 = vrot.slane %v866, 4
      %v868 = vrot.slane %v193, 5
      %v869 = vsel %vm813, %v867, %v868
      %v870 = vrot.slane %v868, 4
      %v871 = vrot.slane %v194, 5
      %v872 = vsel %vm813, %v870, %v871
      %v873 = vrot.slane %v871, 4
      %v874 = vrot.slane %v195, 5
      %v875 = vsel %vm813, %v873, %v874
      %v876 = vrot.slane %v874, 4
      %v877 = vrot.slane %v196, 5
      %v878 = vsel %vm813, %v876, %v877
      %v879 = vrot.slane %v197, 5
      %v880 = vrot.slane %v879, 4
      %v881 = vrot.slane %v198, 5
      %v882 = vsel %vm813, %v880, %v881
      %v883 = vrot.slane %v881, 4
      %v884 = vrot.slane %v199, 5
      %v885 = vsel %vm813, %v883, %v884
      %v886 = vrot.slane %v884, 4
      %v887 = vrot.slane %v200, 5
      %v888 = vsel %vm813, %v886, %v887
      %v889 = vrot.slane %v887, 4
      %v890 = vrot.slane %v201, 5
      %v891 = vsel %vm813, %v889, %v890
      %v892 = vrot.slane %v202, 5
      %v893 = vrot.slane %v892, 4
      %v894 = vrot.slane %v203, 5
      %v895 = vsel %vm813, %v893, %v894
      %v896 = vrot.slane %v894, 4
      %v897 = vrot.slane %v204, 5
      %v898 = vsel %vm813, %v896, %v897
      %v899 = vrot.slane %v897, 4
      %v900 = vrot.slane %v205, 5
      %v901 = vsel %vm813, %v899, %v900
      %v902 = vrot.slane %v900, 4
      %v903 = vrot.slane %v206, 5
      %v904 = vsel %vm813, %v902, %v903
      %v905 = vrot.slane %v207, 5
      %v906 = vrot.slane %v905, 4
      %v907 = vrot.slane %v208, 5
      %v908 = vsel %vm813, %v906, %v907
      %v909 = vrot.slane %v907, 4
      %v910 = vrot.slane %v209, 5
      %v911 = vsel %vm813, %v909, %v910
      %v912 = vrot.slane %v910, 4
      %v913 = vrot.slane %v210, 5
      %v914 = vsel %vm813, %v912, %v913
      %v915 = vrot.slane %v913, 4
      %v916 = vrot.slane %v211, 5
      %v917 = vsel %vm813, %v915, %v916
      %v918 = vunpack.c.l.b16 %v817
      %v919 = vunpack.c.l.b16 %v820
      %v920 = vunpack.c.l.b16 %v823
      %v921 = vunpack.c.l.b16 %v826
      %v922 = vunpack.c.l.b16 %v830
      %v923 = vunpack.c.l.b16 %v833
      %v924 = vunpack.c.l.b16 %v836
      %v925 = vunpack.c.l.b16 %v839
      %v926 = vunpack.c.l.b16 %v843
      %v927 = vunpack.c.l.b16 %v846
      %v928 = vunpack.c.l.b16 %v849
      %v929 = vunpack.c.l.b16 %v852
      %v930 = vunpack.c.l.b16 %v856
      %v931 = vunpack.c.l.b16 %v859
      %v932 = vunpack.c.l.b16 %v862
      %v933 = vunpack.c.l.b16 %v865
      %v934 = vunpack.c.l.b16 %v869
      %v935 = vunpack.c.l.b16 %v872
      %v936 = vunpack.c.l.b16 %v875
      %v937 = vunpack.c.l.b16 %v878
      %v938 = vunpack.c.l.b16 %v882
      %v939 = vunpack.c.l.b16 %v885
      %v940 = vunpack.c.l.b16 %v888
      %v941 = vunpack.c.l.b16 %v891
      %v942 = vunpack.c.l.b16 %v895
      %v943 = vunpack.c.l.b16 %v898
      %v944 = vunpack.c.l.b16 %v901
      %v945 = vunpack.c.l.b16 %v904
      %v946 = vunpack.c.l.b16 %v908
      %v947 = vunpack.c.l.b16 %v911
      %v948 = vunpack.c.l.b16 %v914
      %v949 = vunpack.c.l.b16 %v917
      %v950 = vpack.c.b16 %v919, %v918
      %v951 = vpack.c.b16 %v921, %v920
      %v952 = vpack.c.b16 %v923, %v922
      %v953 = vpack.c.b16 %v925, %v924
      %v954 = vpack.c.b16 %v927, %v926
      %v955 = vpack.c.b16 %v929, %v928
      %v956 = vpack.c.b16 %v931, %v930
      %v957 = vpack.c.b16 %v933, %v932
      %v958 = vpack.c.b16 %v935, %v934
      %v959 = vpack.c.b16 %v937, %v936
      %v960 = vpack.c.b16 %v939, %v938
      %v961 = vpack.c.b16 %v941, %v940
      %v962 = vpack.c.b16 %v943, %v942
      %v963 = vpack.c.b16 %v945, %v944
      %v964 = vpack.c.b16 %v947, %v946
      %v965 = vpack.c.b16 %v949, %v948
      %966 = vrot.lane.b32.xlu0 %v950, 8
      %v967 = vpop.permute.xlu0 %966
      %968 = vrot.lane.b32.xlu0 %v951, 8
      %v969 = vpop.permute.xlu0 %968
      %970 = vrot.lane.b32.xlu0 %v952, 8
      %v971 = vpop.permute.xlu0 %970
      %972 = vrot.lane.b32.xlu0 %v953, 8
      %v973 = vpop.permute.xlu0 %972
      %974 = vrot.lane.b32.xlu0 %v954, 8
      %v975 = vpop.permute.xlu0 %974
      %976 = vrot.lane.b32.xlu0 %v955, 8
      %v977 = vpop.permute.xlu0 %976
      %978 = vrot.lane.b32.xlu0 %v956, 8
      %v979 = vpop.permute.xlu0 %978
      %980 = vrot.lane.b32.xlu0 %v957, 8
      %v981 = vpop.permute.xlu0 %980
      %982 = vrot.lane.b32.xlu0 %v958, 8
      %v983 = vpop.permute.xlu0 %982
      %984 = vrot.lane.b32.xlu0 %v959, 8
      %v985 = vpop.permute.xlu0 %984
      %986 = vrot.lane.b32.xlu0 %v960, 8
      %v987 = vpop.permute.xlu0 %986
      %988 = vrot.lane.b32.xlu0 %v961, 8
      %v989 = vpop.permute.xlu0 %988
      %990 = vrot.lane.b32.xlu0 %v962, 8
      %v991 = vpop.permute.xlu0 %990
      %992 = vrot.lane.b32.xlu0 %v963, 8
      %v993 = vpop.permute.xlu0 %992
      %994 = vrot.lane.b32.xlu0 %v964, 8
      %v995 = vpop.permute.xlu0 %994
      %996 = vrot.lane.b32.xlu0 %v965, 8
      %v997 = vpop.permute.xlu0 %996
      %vm1014 = vcmask 97344
      %1015 = vst.msk [vmem:[#allocation2] sm:$0xff] %vm1014, %v967
      %1016 = vst.msk [vmem:[#allocation2 + $0x8] sm:$0xff] %vm1014, %v969
      %1017 = vst.msk [vmem:[#allocation2 + $0x10] sm:$0xff] %vm1014, %v971
      %1018 = vst.msk [vmem:[#allocation2 + $0x18] sm:$0xff] %vm1014, %v973
      %1019 = vst.msk [vmem:[#allocation2 + $0x20] sm:$0xff] %vm1014, %v975
      %1020 = vst.msk [vmem:[#allocation2 + $0x28] sm:$0xff] %vm1014, %v977
      %1021 = vst.msk [vmem:[#allocation2 + $0x30] sm:$0xff] %vm1014, %v979
      %1022 = vst.msk [vmem:[#allocation2 + $0x38] sm:$0xff] %vm1014, %v981
      %1023 = vst.msk [vmem:[#allocation2 + $0x40] sm:$0xff] %vm1014, %v983
      %1024 = vst.msk [vmem:[#allocation2 + $0x48] sm:$0xff] %vm1014, %v985
      %1025 = vst.msk [vmem:[#allocation2 + $0x50] sm:$0xff] %vm1014, %v987
      %1026 = vst.msk [vmem:[#allocation2 + $0x58] sm:$0xff] %vm1014, %v989
      %1027 = vst.msk [vmem:[#allocation2 + $0x60] sm:$0xff] %vm1014, %v991
      %1028 = vst.msk [vmem:[#allocation2 + $0x68] sm:$0xff] %vm1014, %v993
      %1029 = vst.msk [vmem:[#allocation2 + $0x70] sm:$0xff] %vm1014, %v995
      %1030 = vst.msk [vmem:[#allocation2 + $0x78] sm:$0xff] %vm1014, %v997
      %v1035 = vunpack.c.l.b16 %v212
      %v1036 = vunpack.c.l.b16 %v213
      %v1037 = vunpack.c.l.b16 %v214
      %v1038 = vunpack.c.l.b16 %v215
      %v1039 = vpack.c.b16 %v1036, %v1035
      %v1040 = vpack.c.b16 %v1038, %v1037
      %1041 = vrot.lane.b32.xlu0 %v288, 12
      %v1042 = vpop.permute.xlu0 %1041
      %1043 = vrot.lane.b32.xlu0 %v289, 12
      %v1044 = vpop.permute.xlu0 %1043
      %1045 = vrot.lane.b32.xlu0 %v290, 12
      %v1046 = vpop.permute.xlu0 %1045
      %1047 = vrot.lane.b32.xlu0 %v291, 12
      %v1048 = vpop.permute.xlu0 %1047
      %1049 = vrot.lane.b32.xlu0 %v292, 12
      %v1050 = vpop.permute.xlu0 %1049
      %1051 = vrot.lane.b32.xlu0 %v293, 12
      %v1052 = vpop.permute.xlu0 %1051
      %1053 = vrot.lane.b32.xlu0 %v294, 12
      %v1054 = vpop.permute.xlu0 %1053
      %1055 = vrot.lane.b32.xlu0 %v295, 12
      %v1056 = vpop.permute.xlu0 %1055
      %1057 = vrot.lane.b32.xlu0 %v296, 12
      %v1058 = vpop.permute.xlu0 %1057
      %1059 = vrot.lane.b32.xlu0 %v297, 12
      %v1060 = vpop.permute.xlu0 %1059
      %1061 = vrot.lane.b32.xlu0 %v298, 12
      %v1062 = vpop.permute.xlu0 %1061
      %1063 = vrot.lane.b32.xlu0 %v299, 12
      %v1064 = vpop.permute.xlu0 %1063
      %1065 = vrot.lane.b32.xlu0 %v300, 12
      %v1066 = vpop.permute.xlu0 %1065
      %1067 = vrot.lane.b32.xlu0 %v301, 12
      %v1068 = vpop.permute.xlu0 %1067
      %1069 = vrot.lane.b32.xlu0 %v1039, 12
      %v1070 = vpop.permute.xlu0 %1069
      %1071 = vrot.lane.b32.xlu0 %v1040, 12
      %v1072 = vpop.permute.xlu0 %1071
      %vm1089 = vcmask 130144
      %1090 = vst.msk [vmem:[#allocation2] sm:$0xff] %vm1089, %v1042
      %1091 = vst.msk [vmem:[#allocation2 + $0x8] sm:$0xff] %vm1089, %v1044
      %1092 = vst.msk [vmem:[#allocation2 + $0x10] sm:$0xff] %vm1089, %v1046
      %1093 = vst.msk [vmem:[#allocation2 + $0x18] sm:$0xff] %vm1089, %v1048
      %1094 = vst.msk [vmem:[#allocation2 + $0x20] sm:$0xff] %vm1089, %v1050
      %1095 = vst.msk [vmem:[#allocation2 + $0x28] sm:$0xff] %vm1089, %v1052
      %1096 = vst.msk [vmem:[#allocation2 + $0x30] sm:$0xff] %vm1089, %v1054
      %1097 = vst.msk [vmem:[#allocation2 + $0x38] sm:$0xff] %vm1089, %v1056
      %1098 = vst.msk [vmem:[#allocation2 + $0x40] sm:$0xff] %vm1089, %v1058
      %1099 = vst.msk [vmem:[#allocation2 + $0x48] sm:$0xff] %vm1089, %v1060
      %1100 = vst.msk [vmem:[#allocation2 + $0x50] sm:$0xff] %vm1089, %v1062
      %1101 = vst.msk [vmem:[#allocation2 + $0x58] sm:$0xff] %vm1089, %v1064
      %1102 = vst.msk [vmem:[#allocation2 + $0x60] sm:$0xff] %vm1089, %v1066
      %1103 = vst.msk [vmem:[#allocation2 + $0x68] sm:$0xff] %vm1089, %v1068
      %1104 = vst.msk [vmem:[#allocation2 + $0x70] sm:$0xff] %vm1089, %v1070
      %1105 = vst.msk [vmem:[#allocation2 + $0x78] sm:$0xff] %vm1089, %v1072
      %v1107 = vshrl.u32 %v212, 16
      %v1109 = vrot.slane %v1107, 4
      %v1110 = vshll.u32 %v212, 16
      %v1112 = vrot.slane %v1110, 5
      %v1113 = vor.u32 %v1109, %v1112
      %v1114 = vrot.slane %v1113, 4
      %v1116 = vshll.u32 %v213, 16
      %v1118 = vrot.slane %v1116, 5
      %v1119 = vsel %vm337, %v1114, %v1118
      %v1120 = vshrl.u32 %v213, 16
      %v1122 = vrot.slane %v1120, 4
      %v1123 = vor.u32 %v1122, %v1118
      %v1124 = vrot.slane %v1123, 4
      %v1126 = vshll.u32 %v214, 16
      %v1128 = vrot.slane %v1126, 5
      %v1129 = vsel %vm337, %v1124, %v1128
      %v1130 = vshrl.u32 %v214, 16
      %v1132 = vrot.slane %v1130, 4
      %v1133 = vor.u32 %v1132, %v1128
      %v1134 = vrot.slane %v1133, 4
      %v1136 = vshll.u32 %v215, 16
      %v1138 = vrot.slane %v1136, 5
      %v1139 = vsel %vm337, %v1134, %v1138
      %v1140 = vshrl.u32 %v215, 16
      %v1142 = vrot.slane %v1140, 4
      %v1143 = vor.u32 %v1142, %v1138
      %v1144 = vrot.slane %v1143, 4
      %v1146 = vshll.u32 %v216, 16
      %v1148 = vrot.slane %v1146, 5
      %v1149 = vsel %vm337, %v1144, %v1148
      %v1150 = vunpack.c.l.b16 %v1119
      %v1151 = vunpack.c.l.b16 %v1129
      %v1152 = vunpack.c.l.b16 %v1139
      %v1153 = vunpack.c.l.b16 %v1149
      %v1154 = vpack.c.b16 %v1151, %v1150
      %v1155 = vpack.c.b16 %v1153, %v1152
      %1156 = vrot.lane.b32.xlu0 %v724, 16
      %v1157 = vpop.permute.xlu0 %1156
      %1158 = vrot.lane.b32.xlu0 %v725, 16
      %v1159 = vpop.permute.xlu0 %1158
      %1160 = vrot.lane.b32.xlu0 %v726, 16
      %v1161 = vpop.permute.xlu0 %1160
      %1162 = vrot.lane.b32.xlu0 %v727, 16
      %v1163 = vpop.permute.xlu0 %1162
      %1164 = vrot.lane.b32.xlu0 %v728, 16
      %v1165 = vpop.permute.xlu0 %1164
      %1166 = vrot.lane.b32.xlu0 %v729, 16
      %v1167 = vpop.permute.xlu0 %1166
      %1168 = vrot.lane.b32.xlu0 %v730, 16
      %v1169 = vpop.permute.xlu0 %1168
      %1170 = vrot.lane.b32.xlu0 %v731, 16
      %v1171 = vpop.permute.xlu0 %1170
      %1172 = vrot.lane.b32.xlu0 %v732, 16
      %v1173 = vpop.permute.xlu0 %1172
      %1174 = vrot.lane.b32.xlu0 %v733, 16
      %v1175 = vpop.permute.xlu0 %1174
      %1176 = vrot.lane.b32.xlu0 %v734, 16
      %v1177 = vpop.permute.xlu0 %1176
      %1178 = vrot.lane.b32.xlu0 %v735, 16
      %v1179 = vpop.permute.xlu0 %1178
      %1180 = vrot.lane.b32.xlu0 %v736, 16
      %v1181 = vpop.permute.xlu0 %1180
      %1182 = vrot.lane.b32.xlu0 %v737, 16
      %v1183 = vpop.permute.xlu0 %1182
      %1184 = vrot.lane.b32.xlu0 %v1154, 16
      %v1185 = vpop.permute.xlu0 %1184
      %1186 = vrot.lane.b32.xlu0 %v1155, 16
      %v1187 = vpop.permute.xlu0 %1186
      %vm1204 = vcmask 162944
      %1205 = vst.msk [vmem:[#allocation2] sm:$0xff] %vm1204, %v1157
      %1206 = vst.msk [vmem:[#allocation2 + $0x8] sm:$0xff] %vm1204, %v1159
      %1207 = vst.msk [vmem:[#allocation2 + $0x10] sm:$0xff] %vm1204, %v1161
      %1208 = vst.msk [vmem:[#allocation2 + $0x18] sm:$0xff] %vm1204, %v1163
      %1209 = vst.msk [vmem:[#allocation2 + $0x20] sm:$0xff] %vm1204, %v1165
      %1210 = vst.msk [vmem:[#allocation2 + $0x28] sm:$0xff] %vm1204, %v1167
      %1211 = vst.msk [vmem:[#allocation2 + $0x30] sm:$0xff] %vm1204, %v1169
      %1212 = vst.msk [vmem:[#allocation2 + $0x38] sm:$0xff] %vm1204, %v1171
      %1213 = vst.msk [vmem:[#allocation2 + $0x40] sm:$0xff] %vm1204, %v1173
      %1214 = vst.msk [vmem:[#allocation2 + $0x48] sm:$0xff] %vm1204, %v1175
      %1215 = vst.msk [vmem:[#allocation2 + $0x50] sm:$0xff] %vm1204, %v1177
      %1216 = vst.msk [vmem:[#allocation2 + $0x58] sm:$0xff] %vm1204, %v1179
      %1217 = vst.msk [vmem:[#allocation2 + $0x60] sm:$0xff] %vm1204, %v1181
      %1218 = vst.msk [vmem:[#allocation2 + $0x68] sm:$0xff] %vm1204, %v1183
      %1219 = vst.msk [vmem:[#allocation2 + $0x70] sm:$0xff] %vm1204, %v1185
      %1220 = vst.msk [vmem:[#allocation2 + $0x78] sm:$0xff] %vm1204, %v1187
      %v1222 = vrot.slane %v212, 5
      %v1223 = vrot.slane %v1222, 4
      %v1224 = vrot.slane %v213, 5
      %v1225 = vsel %vm813, %v1223, %v1224
      %v1226 = vrot.slane %v1224, 4
      %v1227 = vrot.slane %v214, 5
      %v1228 = vsel %vm813, %v1226, %v1227
      %v1229 = vrot.slane %v1227, 4
      %v1230 = vrot.slane %v215, 5
      %v1231 = vsel %vm813, %v1229, %v1230
      %v1232 = vrot.slane %v1230, 4
      %v1233 = vrot.slane %v216, 5
      %v1234 = vsel %vm813, %v1232, %v1233
      %v1235 = vunpack.c.l.b16 %v1225
      %v1236 = vunpack.c.l.b16 %v1228
      %v1237 = vunpack.c.l.b16 %v1231
      %v1238 = vunpack.c.l.b16 %v1234
      %v1239 = vpack.c.b16 %v1236, %v1235
      %v1240 = vpack.c.b16 %v1238, %v1237
      %1241 = vrot.lane.b32.xlu0 %v952, 20
      %v1242 = vpop.permute.xlu0 %1241
      %1243 = vrot.lane.b32.xlu0 %v953, 20
      %v1244 = vpop.permute.xlu0 %1243
      %1245 = vrot.lane.b32.xlu0 %v954, 20
      %v1246 = vpop.permute.xlu0 %1245
      %1247 = vrot.lane.b32.xlu0 %v955, 20
      %v1248 = vpop.permute.xlu0 %1247
      %1249 = vrot.lane.b32.xlu0 %v956, 20
      %v1250 = vpop.permute.xlu0 %1249
      %1251 = vrot.lane.b32.xlu0 %v957, 20
      %v1252 = vpop.permute.xlu0 %1251
      %1253 = vrot.lane.b32.xlu0 %v958, 20
      %v1254 = vpop.permute.xlu0 %1253
      %1255 = vrot.lane.b32.xlu0 %v959, 20
      %v1256 = vpop.permute.xlu0 %1255
      %1257 = vrot.lane.b32.xlu0 %v960, 20
      %v1258 = vpop.permute.xlu0 %1257
      %1259 = vrot.lane.b32.xlu0 %v961, 20
      %v1260 = vpop.permute.xlu0 %1259
      %1261 = vrot.lane.b32.xlu0 %v962, 20
      %v1262 = vpop.permute.xlu0 %1261
      %1263 = vrot.lane.b32.xlu0 %v963, 20
      %v1264 = vpop.permute.xlu0 %1263
      %1265 = vrot.lane.b32.xlu0 %v964, 20
      %v1266 = vpop.permute.xlu0 %1265
      %1267 = vrot.lane.b32.xlu0 %v965, 20
      %v1268 = vpop.permute.xlu0 %1267
      %1269 = vrot.lane.b32.xlu0 %v1239, 20
      %v1270 = vpop.permute.xlu0 %1269
      %1271 = vrot.lane.b32.xlu0 %v1240, 20
      %v1272 = vpop.permute.xlu0 %1271
      %vm1289 = vcmask 195744
      %1290 = vst.msk [vmem:[#allocation2] sm:$0xff] %vm1289, %v1242
      %1291 = vst.msk [vmem:[#allocation2 + $0x8] sm:$0xff] %vm1289, %v1244
      %1292 = vst.msk [vmem:[#allocation2 + $0x10] sm:$0xff] %vm1289, %v1246
      %1293 = vst.msk [vmem:[#allocation2 + $0x18] sm:$0xff] %vm1289, %v1248
      %1294 = vst.msk [vmem:[#allocation2 + $0x20] sm:$0xff] %vm1289, %v1250
      %1295 = vst.msk [vmem:[#allocation2 + $0x28] sm:$0xff] %vm1289, %v1252
      %1296 = vst.msk [vmem:[#allocation2 + $0x30] sm:$0xff] %vm1289, %v1254
      %1297 = vst.msk [vmem:[#allocation2 + $0x38] sm:$0xff] %vm1289, %v1256
      %1298 = vst.msk [vmem:[#allocation2 + $0x40] sm:$0xff] %vm1289, %v1258
      %1299 = vst.msk [vmem:[#allocation2 + $0x48] sm:$0xff] %vm1289, %v1260
      %1300 = vst.msk [vmem:[#allocation2 + $0x50] sm:$0xff] %vm1289, %v1262
      %1301 = vst.msk [vmem:[#allocation2 + $0x58] sm:$0xff] %vm1289, %v1264
      %1302 = vst.msk [vmem:[#allocation2 + $0x60] sm:$0xff] %vm1289, %v1266
      %1303 = vst.msk [vmem:[#allocation2 + $0x68] sm:$0xff] %vm1289, %v1268
      %1304 = vst.msk [vmem:[#allocation2 + $0x70] sm:$0xff] %vm1289, %v1270
      %1305 = vst.msk [vmem:[#allocation2 + $0x78] sm:$0xff] %vm1289, %v1272
      %v1310 = vunpack.c.l.b16 %v217
      %v1311 = vunpack.c.l.b16 %v218
      %v1312 = vunpack.c.l.b16 %v219
      %v1313 = vunpack.c.l.b16 %v220
      %v1314 = vpack.c.b16 %v1311, %v1310
      %v1315 = vpack.c.b16 %v1313, %v1312
      %1316 = vrot.lane.b32.xlu0 %v290, 24
      %v1317 = vpop.permute.xlu0 %1316
      %1318 = vrot.lane.b32.xlu0 %v291, 24
      %v1319 = vpop.permute.xlu0 %1318
      %1320 = vrot.lane.b32.xlu0 %v292, 24
      %v1321 = vpop.permute.xlu0 %1320
      %1322 = vrot.lane.b32.xlu0 %v293, 24
      %v1323 = vpop.permute.xlu0 %1322
      %1324 = vrot.lane.b32.xlu0 %v294, 24
      %v1325 = vpop.permute.xlu0 %1324
      %1326 = vrot.lane.b32.xlu0 %v295, 24
      %v1327 = vpop.permute.xlu0 %1326
      %1328 = vrot.lane.b32.xlu0 %v296, 24
      %v1329 = vpop.permute.xlu0 %1328
      %1330 = vrot.lane.b32.xlu0 %v297, 24
      %v1331 = vpop.permute.xlu0 %1330
      %1332 = vrot.lane.b32.xlu0 %v298, 24
      %v1333 = vpop.permute.xlu0 %1332
      %1334 = vrot.lane.b32.xlu0 %v299, 24
      %v1335 = vpop.permute.xlu0 %1334
      %1336 = vrot.lane.b32.xlu0 %v300, 24
      %v1337 = vpop.permute.xlu0 %1336
      %1338 = vrot.lane.b32.xlu0 %v301, 24
      %v1339 = vpop.permute.xlu0 %1338
      %1340 = vrot.lane.b32.xlu0 %v1039, 24
      %v1341 = vpop.permute.xlu0 %1340
      %1342 = vrot.lane.b32.xlu0 %v1040, 24
      %v1343 = vpop.permute.xlu0 %1342
      %1344 = vrot.lane.b32.xlu0 %v1314, 24
      %v1345 = vpop.permute.xlu0 %1344
      %1346 = vrot.lane.b32.xlu0 %v1315, 24
      %v1347 = vpop.permute.xlu0 %1346
      %vm1364 = vcmask 228544
      %1365 = vst.msk [vmem:[#allocation2] sm:$0xff] %vm1364, %v1317
      %1366 = vst.msk [vmem:[#allocation2 + $0x8] sm:$0xff] %vm1364, %v1319
      %1367 = vst.msk [vmem:[#allocation2 + $0x10] sm:$0xff] %vm1364, %v1321
      %1368 = vst.msk [vmem:[#allocation2 + $0x18] sm:$0xff] %vm1364, %v1323
      %1369 = vst.msk [vmem:[#allocation2 + $0x20] sm:$0xff] %vm1364, %v1325
      %1370 = vst.msk [vmem:[#allocation2 + $0x28] sm:$0xff] %vm1364, %v1327
      %1371 = vst.msk [vmem:[#allocation2 + $0x30] sm:$0xff] %vm1364, %v1329
      %1372 = vst.msk [vmem:[#allocation2 + $0x38] sm:$0xff] %vm1364, %v1331
      %1373 = vst.msk [vmem:[#allocation2 + $0x40] sm:$0xff] %vm1364, %v1333
      %1374 = vst.msk [vmem:[#allocation2 + $0x48] sm:$0xff] %vm1364, %v1335
      %1375 = vst.msk [vmem:[#allocation2 + $0x50] sm:$0xff] %vm1364, %v1337
      %1376 = vst.msk [vmem:[#allocation2 + $0x58] sm:$0xff] %vm1364, %v1339
      %1377 = vst.msk [vmem:[#allocation2 + $0x60] sm:$0xff] %vm1364, %v1341
      %1378 = vst.msk [vmem:[#allocation2 + $0x68] sm:$0xff] %vm1364, %v1343
      %1379 = vst.msk [vmem:[#allocation2 + $0x70] sm:$0xff] %vm1364, %v1345
      %1380 = vst.msk [vmem:[#allocation2 + $0x78] sm:$0xff] %vm1364, %v1347
      %v1382 = vshrl.u32 %v217, 16
      %v1384 = vrot.slane %v1382, 4
      %v1385 = vshll.u32 %v217, 16
      %v1387 = vrot.slane %v1385, 5
      %v1388 = vor.u32 %v1384, %v1387
      %v1389 = vrot.slane %v1388, 4
      %v1391 = vshll.u32 %v218, 16
      %v1393 = vrot.slane %v1391, 5
      %v1394 = vsel %vm337, %v1389, %v1393
      %v1395 = vshrl.u32 %v218, 16
      %v1397 = vrot.slane %v1395, 4
      %v1398 = vor.u32 %v1397, %v1393
      %v1399 = vrot.slane %v1398, 4
      %v1401 = vshll.u32 %v219, 16
      %v1403 = vrot.slane %v1401, 5
      %v1404 = vsel %vm337, %v1399, %v1403
      %v1405 = vshrl.u32 %v219, 16
      %v1407 = vrot.slane %v1405, 4
      %v1408 = vor.u32 %v1407, %v1403
      %v1409 = vrot.slane %v1408, 4
      %v1411 = vshll.u32 %v220, 16
      %v1413 = vrot.slane %v1411, 5
      %v1414 = vsel %vm337, %v1409, %v1413
      %v1415 = vshrl.u32 %v220, 16
      %v1417 = vrot.slane %v1415, 4
      %v1418 = vor.u32 %v1417, %v1413
      %v1419 = vrot.slane %v1418, 4
      %v1421 = vshll.u32 %v221, 16
      %v1423 = vrot.slane %v1421, 5
      %v1424 = vsel %vm337, %v1419, %v1423
      %v1425 = vunpack.c.l.b16 %v1394
      %v1426 = vunpack.c.l.b16 %v1404
      %v1427 = vunpack.c.l.b16 %v1414
      %v1428 = vunpack.c.l.b16 %v1424
      %v1429 = vpack.c.b16 %v1426, %v1425
      %v1430 = vpack.c.b16 %v1428, %v1427
      %1431 = vrot.lane.b32.xlu0 %v726, 28
      %v1432 = vpop.permute.xlu0 %1431
      %1433 = vrot.lane.b32.xlu0 %v727, 28
      %v1434 = vpop.permute.xlu0 %1433
      %1435 = vrot.lane.b32.xlu0 %v728, 28
      %v1436 = vpop.permute.xlu0 %1435
      %1437 = vrot.lane.b32.xlu0 %v729, 28
      %v1438 = vpop.permute.xlu0 %1437
      %1439 = vrot.lane.b32.xlu0 %v730, 28
      %v1440 = vpop.permute.xlu0 %1439
      %1441 = vrot.lane.b32.xlu0 %v731, 28
      %v1442 = vpop.permute.xlu0 %1441
      %1443 = vrot.lane.b32.xlu0 %v732, 28
      %v1444 = vpop.permute.xlu0 %1443
      %1445 = vrot.lane.b32.xlu0 %v733, 28
      %v1446 = vpop.permute.xlu0 %1445
      %1447 = vrot.lane.b32.xlu0 %v734, 28
      %v1448 = vpop.permute.xlu0 %1447
      %1449 = vrot.lane.b32.xlu0 %v735, 28
      %v1450 = vpop.permute.xlu0 %1449
      %1451 = vrot.lane.b32.xlu0 %v736, 28
      %v1452 = vpop.permute.xlu0 %1451
      %1453 = vrot.lane.b32.xlu0 %v737, 28
      %v1454 = vpop.permute.xlu0 %1453
      %1455 = vrot.lane.b32.xlu0 %v1154, 28
      %v1456 = vpop.permute.xlu0 %1455
      %1457 = vrot.lane.b32.xlu0 %v1155, 28
      %v1458 = vpop.permute.xlu0 %1457
      %1459 = vrot.lane.b32.xlu0 %v1429, 28
      %v1460 = vpop.permute.xlu0 %1459
      %1461 = vrot.lane.b32.xlu0 %v1430, 28
      %v1462 = vpop.permute.xlu0 %1461
      %vm1479 = vcmask 261344
      %1480 = vst.msk [vmem:[#allocation2] sm:$0xff] %vm1479, %v1432
      %1481 = vst.msk [vmem:[#allocation2 + $0x8] sm:$0xff] %vm1479, %v1434
      %1482 = vst.msk [vmem:[#allocation2 + $0x10] sm:$0xff] %vm1479, %v1436
      %1483 = vst.msk [vmem:[#allocation2 + $0x18] sm:$0xff] %vm1479, %v1438
      %1484 = vst.msk [vmem:[#allocation2 + $0x20] sm:$0xff] %vm1479, %v1440
      %1485 = vst.msk [vmem:[#allocation2 + $0x28] sm:$0xff] %vm1479, %v1442
      %1486 = vst.msk [vmem:[#allocation2 + $0x30] sm:$0xff] %vm1479, %v1444
      %1487 = vst.msk [vmem:[#allocation2 + $0x38] sm:$0xff] %vm1479, %v1446
      %1488 = vst.msk [vmem:[#allocation2 + $0x40] sm:$0xff] %vm1479, %v1448
      %1489 = vst.msk [vmem:[#allocation2 + $0x48] sm:$0xff] %vm1479, %v1450
      %1490 = vst.msk [vmem:[#allocation2 + $0x50] sm:$0xff] %vm1479, %v1452
      %1491 = vst.msk [vmem:[#allocation2 + $0x58] sm:$0xff] %vm1479, %v1454
      %1492 = vst.msk [vmem:[#allocation2 + $0x60] sm:$0xff] %vm1479, %v1456
      %1493 = vst.msk [vmem:[#allocation2 + $0x68] sm:$0xff] %vm1479, %v1458
      %1494 = vst.msk [vmem:[#allocation2 + $0x70] sm:$0xff] %vm1479, %v1460
      %1495 = vst.msk [vmem:[#allocation2 + $0x78] sm:$0xff] %vm1479, %v1462
      %v1497 = vrot.slane %v217, 5
      %v1498 = vrot.slane %v1497, 4
      %v1499 = vrot.slane %v218, 5
      %v1500 = vsel %vm813, %v1498, %v1499
      %v1501 = vrot.slane %v1499, 4
      %v1502 = vrot.slane %v219, 5
      %v1503 = vsel %vm813, %v1501, %v1502
      %v1504 = vrot.slane %v1502, 4
      %v1505 = vrot.slane %v220, 5
      %v1506 = vsel %vm813, %v1504, %v1505
      %v1507 = vrot.slane %v1505, 4
      %v1508 = vrot.slane %v221, 5
      %v1509 = vsel %vm813, %v1507, %v1508
      %v1510 = vunpack.c.l.b16 %v1500
      %v1511 = vunpack.c.l.b16 %v1503
      %v1512 = vunpack.c.l.b16 %v1506
      %v1513 = vunpack.c.l.b16 %v1509
      %v1514 = vpack.c.b16 %v1511, %v1510
      %v1515 = vpack.c.b16 %v1513, %v1512
      %1516 = vrot.lane.b32.xlu0 %v954, 32
      %v1517 = vpop.permute.xlu0 %1516
      %1518 = vrot.lane.b32.xlu0 %v955, 32
      %v1519 = vpop.permute.xlu0 %1518
      %1520 = vrot.lane.b32.xlu0 %v956, 32
      %v1521 = vpop.permute.xlu0 %1520
      %1522 = vrot.lane.b32.xlu0 %v957, 32
      %v1523 = vpop.permute.xlu0 %1522
      %1524 = vrot.lane.b32.xlu0 %v958, 32
      %v1525 = vpop.permute.xlu0 %1524
      %1526 = vrot.lane.b32.xlu0 %v959, 32
      %v1527 = vpop.permute.xlu0 %1526
      %1528 = vrot.lane.b32.xlu0 %v960, 32
      %v1529 = vpop.permute.xlu0 %1528
      %1530 = vrot.lane.b32.xlu0 %v961, 32
      %v1531 = vpop.permute.xlu0 %1530
      %1532 = vrot.lane.b32.xlu0 %v962, 32
      %v1533 = vpop.permute.xlu0 %1532
      %1534 = vrot.lane.b32.xlu0 %v963, 32
      %v1535 = vpop.permute.xlu0 %1534
      %1536 = vrot.lane.b32.xlu0 %v964, 32
      %v1537 = vpop.permute.xlu0 %1536
      %1538 = vrot.lane.b32.xlu0 %v965, 32
      %v1539 = vpop.permute.xlu0 %1538
      %1540 = vrot.lane.b32.xlu0 %v1239, 32
      %v1541 = vpop.permute.xlu0 %1540
      %1542 = vrot.lane.b32.xlu0 %v1240, 32
      %v1543 = vpop.permute.xlu0 %1542
      %1544 = vrot.lane.b32.xlu0 %v1514, 32
      %v1545 = vpop.permute.xlu0 %1544
      %1546 = vrot.lane.b32.xlu0 %v1515, 32
      %v1547 = vpop.permute.xlu0 %1546
      %vm1564 = vcmask 294144
      %1565 = vst.msk [vmem:[#allocation2] sm:$0xff] %vm1564, %v1517
      %1566 = vst.msk [vmem:[#allocation2 + $0x8] sm:$0xff] %vm1564, %v1519
      %1567 = vst.msk [vmem:[#allocation2 + $0x10] sm:$0xff] %vm1564, %v1521
      %1568 = vst.msk [vmem:[#allocation2 + $0x18] sm:$0xff] %vm1564, %v1523
      %1569 = vst.msk [vmem:[#allocation2 + $0x20] sm:$0xff] %vm1564, %v1525
      %1570 = vst.msk [vmem:[#allocation2 + $0x28] sm:$0xff] %vm1564, %v1527
      %1571 = vst.msk [vmem:[#allocation2 + $0x30] sm:$0xff] %vm1564, %v1529
      %1572 = vst.msk [vmem:[#allocation2 + $0x38] sm:$0xff] %vm1564, %v1531
      %1573 = vst.msk [vmem:[#allocation2 + $0x40] sm:$0xff] %vm1564, %v1533
      %1574 = vst.msk [vmem:[#allocation2 + $0x48] sm:$0xff] %vm1564, %v1535
      %1575 = vst.msk [vmem:[#allocation2 + $0x50] sm:$0xff] %vm1564, %v1537
      %1576 = vst.msk [vmem:[#allocation2 + $0x58] sm:$0xff] %vm1564, %v1539
      %1577 = vst.msk [vmem:[#allocation2 + $0x60] sm:$0xff] %vm1564, %v1541
      %1578 = vst.msk [vmem:[#allocation2 + $0x68] sm:$0xff] %vm1564, %v1543
      %1579 = vst.msk [vmem:[#allocation2 + $0x70] sm:$0xff] %vm1564, %v1545
      %1580 = vst.msk [vmem:[#allocation2 + $0x78] sm:$0xff] %vm1564, %v1547
      %v1581 = vld [vmem:[#allocation2] sm:$0xff]
      %v1582 = vld [vmem:[#allocation2 + $0x8] sm:$0xff]
      %v1583 = vld [vmem:[#allocation2 + $0x10] sm:$0xff]
      %v1584 = vld [vmem:[#allocation2 + $0x18] sm:$0xff]
      %v1585 = vld [vmem:[#allocation2 + $0x20] sm:$0xff]
      %v1586 = vld [vmem:[#allocation2 + $0x28] sm:$0xff]
      %v1587 = vld [vmem:[#allocation2 + $0x30] sm:$0xff]
      %v1588 = vld [vmem:[#allocation2 + $0x38] sm:$0xff]
      %v1589 = vld [vmem:[#allocation2 + $0x40] sm:$0xff]
      %v1590 = vld [vmem:[#allocation2 + $0x48] sm:$0xff]
      %v1591 = vld [vmem:[#allocation2 + $0x50] sm:$0xff]
      %v1592 = vld [vmem:[#allocation2 + $0x58] sm:$0xff]
      %v1593 = vld [vmem:[#allocation2 + $0x60] sm:$0xff]
      %v1594 = vld [vmem:[#allocation2 + $0x68] sm:$0xff]
      %v1595 = vld [vmem:[#allocation2 + $0x70] sm:$0xff]
      %v1596 = vld [vmem:[#allocation2 + $0x78] sm:$0xff]
      %v1597 = vld [vmem:[%s1] sm:$0xf]
      %v1598 = vld [vmem:[%s1 + $0x4] sm:$0xf]
      %v1599 = vld [vmem:[%s1 + $0x8] sm:$0xf]
      %v1600 = vld [vmem:[%s1 + $0xc] sm:$0xf]
      %v1601 = vld [vmem:[%s1 + $0x10] sm:$0x3]
      %v1602 = vld [vmem:[%s2] sm:$0x1]
      %v1604 = vlaneseq
      %v1605 = vshrl.u32 %v1604, 7
      %v1606 = vsub.s32 0, %v1605
      %v1607 = vrot.slane %v1602, %v1606
      %v1614 = vunpack.c.l.b16 %v1597
      %v1615 = vunpack.c.l.b16 %v1598
      %v1616 = vunpack.c.l.b16 %v1599
      %v1617 = vunpack.c.l.b16 %v1600
      %v1618 = vunpack.c.l.b16 %v1601
      %v1619 = vpack.c.b16 %v1615, %v1614
      %v1620 = vpack.c.b16 %v1617, %v1616
      %v1621 = vpack.c.b16 %v1618, %v1618
      %vm1624 = vcmask 293888
      %v1626 = vsel %vm1624, %v1581, 0
      %v1629 = vsel %vm1624, %v1582, 0
      %v1632 = vsel %vm1624, %v1583, 0
      %v1635 = vsel %vm1624, %v1584, 0
      %v1638 = vsel %vm1624, %v1585, 0
      %v1641 = vsel %vm1624, %v1586, 0
      %v1644 = vsel %vm1624, %v1587, 0
      %v1647 = vsel %vm1624, %v1588, 0
      %v1650 = vsel %vm1624, %v1589, 0
      %v1653 = vsel %vm1624, %v1590, 0
      %v1656 = vsel %vm1624, %v1591, 0
      %v1659 = vsel %vm1624, %v1592, 0
      %v1662 = vsel %vm1624, %v1593, 0
      %v1665 = vsel %vm1624, %v1594, 0
      %v1668 = vsel %vm1624, %v1595, 0
      %v1671 = vsel %vm1624, %v1596, 0
      %vm1673 = vcmask 1041408
      %v1675 = vsel %vm1673, %v1621, 0
      %1677 = vmatprep.subr.bf16.mxu0 0
      %1678 = vmatpush1.bf16.msra.mxu0 %v1619
      %1679 = vmatprep.subr.bf16.mxu0 0
      %1680 = vmatpush1.bf16.msra.mxu0 %v1620
      %1681 = vmatprep.subr.bf16.mxu0 0
      %1682 = vmatpush1.bf16.msra.mxu0 %v1675
      %1683 = vmatprep.subr.bf16.mxu0 0
      %1684 = vmatpush1.bf16.msra.mxu0 0
      %1685 = vmatprep.subr.bf16.mxu0 0
      %1686 = vmatpush1.bf16.msra.mxu0 0
      %1687 = vmatprep.subr.bf16.mxu0 0
      %1688 = vmatpush1.bf16.msra.mxu0 0
      %1689 = vmatprep.subr.bf16.mxu0 0
      %1690 = vmatpush1.bf16.msra.mxu0 0
      %1691 = vmatprep.subr.bf16.mxu0 0
      %1692 = vmatpush1.bf16.msra.mxu0 0
      %1693 = vmatprep.subr.bf16.mxu0 0
      %1694 = vmatpush1.bf16.msra.mxu0 0
      %1695 = vmatprep.subr.bf16.mxu0 0
      %1696 = vmatpush1.bf16.msra.mxu0 0
      %1697 = vmatprep.subr.bf16.mxu0 0
      %1698 = vmatpush1.bf16.msra.mxu0 0
      %1699 = vmatprep.subr.bf16.mxu0 0
      %1700 = vmatpush1.bf16.msra.mxu0 0
      %1701 = vmatprep.subr.bf16.mxu0 0
      %1702 = vmatpush1.bf16.msra.mxu0 0
      %1703 = vmatprep.subr.bf16.mxu0 0
      %1704 = vmatpush1.bf16.msra.mxu0 0
      %1705 = vmatprep.subr.bf16.mxu0 0
      %1706 = vmatpush1.bf16.msra.mxu0 0
      %1707 = vmatprep.subr.bf16.mxu0 0
      %1708 = vmatpush1.bf16.msra.mxu0 0
      %1709 = vmatprep.mubr.bf16.mxu0 0
      %1710 = vmatmul.mubr.bf16.gmra.mrb[0].mxu0 %v1626
      %v1711 = vpop.f32.mrb[0].mxu0
      %v1712 = vadd.f32 %v1607, %v1711
      %v1713 = vpop.f32.mrb[0].mxu0
      %v1714 = vpop.f32.mrb[0].mxu0
      %v1715 = vadd.f32 %v1607, %v1714
      %v1716 = vpop.f32.mrb[0].mxu0
      %1717 = vmatprep.mubr.bf16.mxu0 0
      %1718 = vmatmul.mubr.bf16.gmra.mrb[0].mxu0 %v1629
      %v1719 = vpop.f32.mrb[0].mxu0
      %v1720 = vadd.f32 %v1607, %v1719
      %v1721 = vpop.f32.mrb[0].mxu0
      %v1722 = vpop.f32.mrb[0].mxu0
      %v1723 = vadd.f32 %v1607, %v1722
      %v1724 = vpop.f32.mrb[0].mxu0
      %1725 = vmatprep.mubr.bf16.mxu0 0
      %1726 = vmatmul.mubr.bf16.gmra.mrb[0].mxu0 %v1632
      %v1727 = vpop.f32.mrb[0].mxu0
      %v1728 = vadd.f32 %v1607, %v1727
      %v1729 = vpop.f32.mrb[0].mxu0
      %v1730 = vpop.f32.mrb[0].mxu0
      %v1731 = vadd.f32 %v1607, %v1730
      %v1732 = vpop.f32.mrb[0].mxu0
      %1733 = vmatprep.mubr.bf16.mxu0 0
      %1734 = vmatmul.mubr.bf16.gmra.mrb[0].mxu0 %v1635
      %v1735 = vpop.f32.mrb[0].mxu0
      %v1736 = vadd.f32 %v1607, %v1735
      %v1737 = vpop.f32.mrb[0].mxu0
      %v1738 = vpop.f32.mrb[0].mxu0
      %v1739 = vadd.f32 %v1607, %v1738
      %v1740 = vpop.f32.mrb[0].mxu0
      %1741 = vmatprep.mubr.bf16.mxu0 0
      %1742 = vmatmul.mubr.bf16.gmra.mrb[0].mxu0 %v1638
      %v1743 = vpop.f32.mrb[0].mxu0
      %v1744 = vadd.f32 %v1607, %v1743
      %v1745 = vpop.f32.mrb[0].mxu0
      %v1746 = vpop.f32.mrb[0].mxu0
      %v1747 = vadd.f32 %v1607, %v1746
      %v1748 = vpop.f32.mrb[0].mxu0
      %1749 = vmatprep.mubr.bf16.mxu0 0
      %1750 = vmatmul.mubr.bf16.gmra.mrb[0].mxu0 %v1641
      %v1751 = vpop.f32.mrb[0].mxu0
      %v1752 = vadd.f32 %v1607, %v1751
      %v1753 = vpop.f32.mrb[0].mxu0
      %v1754 = vpop.f32.mrb[0].mxu0
      %v1755 = vadd.f32 %v1607, %v1754
      %v1756 = vpop.f32.mrb[0].mxu0
      %1757 = vmatprep.mubr.bf16.mxu0 0
      %1758 = vmatmul.mubr.bf16.gmra.mrb[0].mxu0 %v1644
      %v1759 = vpop.f32.mrb[0].mxu0
      %v1760 = vadd.f32 %v1607, %v1759
      %v1761 = vpop.f32.mrb[0].mxu0
      %v1762 = vpop.f32.mrb[0].mxu0
      %v1763 = vadd.f32 %v1607, %v1762
      %v1764 = vpop.f32.mrb[0].mxu0
      %1765 = vmatprep.mubr.bf16.mxu0 0
      %1766 = vmatmul.mubr.bf16.gmra.mrb[0].mxu0 %v1647
      %v1767 = vpop.f32.mrb[0].mxu0
      %v1768 = vadd.f32 %v1607, %v1767
      %v1769 = vpop.f32.mrb[0].mxu0
      %v1770 = vpop.f32.mrb[0].mxu0
      %v1771 = vadd.f32 %v1607, %v1770
      %v1772 = vpop.f32.mrb[0].mxu0
      %1773 = vmatprep.mubr.bf16.mxu0 0
      %1774 = vmatmul.mubr.bf16.gmra.mrb[0].mxu0 %v1650
      %v1775 = vpop.f32.mrb[0].mxu0
      %v1776 = vadd.f32 %v1607, %v1775
      %v1777 = vpop.f32.mrb[0].mxu0
      %v1778 = vpop.f32.mrb[0].mxu0
      %v1779 = vadd.f32 %v1607, %v1778
      %v1780 = vpop.f32.mrb[0].mxu0
      %1781 = vmatprep.mubr.bf16.mxu0 0
      %1782 = vmatmul.mubr.bf16.gmra.mrb[0].mxu0 %v1653
      %v1783 = vpop.f32.mrb[0].mxu0
      %v1784 = vadd.f32 %v1607, %v1783
      %v1785 = vpop.f32.mrb[0].mxu0
      %v1786 = vpop.f32.mrb[0].mxu0
      %v1787 = vadd.f32 %v1607, %v1786
      %v1788 = vpop.f32.mrb[0].mxu0
      %1789 = vmatprep.mubr.bf16.mxu0 0
      %1790 = vmatmul.mubr.bf16.gmra.mrb[0].mxu0 %v1656
      %v1791 = vpop.f32.mrb[0].mxu0
      %v1792 = vadd.f32 %v1607, %v1791
      %v1793 = vpop.f32.mrb[0].mxu0
      %v1794 = vpop.f32.mrb[0].mxu0
      %v1795 = vadd.f32 %v1607, %v1794
      %v1796 = vpop.f32.mrb[0].mxu0
      %1797 = vmatprep.mubr.bf16.mxu0 0
      %1798 = vmatmul.mubr.bf16.gmra.mrb[0].mxu0 %v1659
      %v1799 = vpop.f32.mrb[0].mxu0
      %v1800 = vadd.f32 %v1607, %v1799
      %v1801 = vpop.f32.mrb[0].mxu0
      %v1802 = vpop.f32.mrb[0].mxu0
      %v1803 = vadd.f32 %v1607, %v1802
      %v1804 = vpop.f32.mrb[0].mxu0
      %1805 = vmatprep.mubr.bf16.mxu0 0
      %1806 = vmatmul.mubr.bf16.gmra.mrb[0].mxu0 %v1662
      %v1807 = vpop.f32.mrb[0].mxu0
      %v1808 = vadd.f32 %v1607, %v1807
      %v1809 = vpop.f32.mrb[0].mxu0
      %v1810 = vpop.f32.mrb[0].mxu0
      %v1811 = vadd.f32 %v1607, %v1810
      %v1812 = vpop.f32.mrb[0].mxu0
      %1813 = vmatprep.mubr.bf16.mxu0 0
      %1814 = vmatmul.mubr.bf16.gmra.mrb[0].mxu0 %v1665
      %v1815 = vpop.f32.mrb[0].mxu0
      %v1816 = vadd.f32 %v1607, %v1815
      %v1817 = vpop.f32.mrb[0].mxu0
      %v1818 = vpop.f32.mrb[0].mxu0
      %v1819 = vadd.f32 %v1607, %v1818
      %v1820 = vpop.f32.mrb[0].mxu0
      %1821 = vmatprep.mubr.bf16.mxu0 0
      %1822 = vmatmul.mubr.bf16.gmra.mrb[0].mxu0 %v1668
      %v1823 = vpop.f32.mrb[0].mxu0
      %v1824 = vadd.f32 %v1607, %v1823
      %v1825 = vpop.f32.mrb[0].mxu0
      %v1826 = vpop.f32.mrb[0].mxu0
      %v1827 = vadd.f32 %v1607, %v1826
      %v1828 = vpop.f32.mrb[0].mxu0
      %1829 = vmatprep.mubr.bf16.mxu0 0
      %1830 = vmatmul.mubr.bf16.gmra.mrb[0].mxu0 %v1671
      %v1831 = vpop.f32.mrb[0].mxu0
      %v1832 = vadd.f32 %v1607, %v1831
      %v1833 = vpop.f32.mrb[0].mxu0
      %v1834 = vpop.f32.mrb[0].mxu0
      %v1835 = vadd.f32 %v1607, %v1834
      %v1836 = vpop.f32.mrb[0].mxu0
      %1837 = vdwg.mxu0
      %1838 = vst [vmem:[%s170] sm:$0xff] %v1712
      %1839 = vst [vmem:[%s170 + $0x8] sm:$0xff] %v1715
      %1840 = vst [vmem:[%s170 + $0x10] sm:$0xff] %v1720
      %1841 = vst [vmem:[%s170 + $0x18] sm:$0xff] %v1723
      %1842 = vst [vmem:[%s170 + $0x20] sm:$0xff] %v1728
      %1843 = vst [vmem:[%s170 + $0x28] sm:$0xff] %v1731
      %1844 = vst [vmem:[%s170 + $0x30] sm:$0xff] %v1736
      %1845 = vst [vmem:[%s170 + $0x38] sm:$0xff] %v1739
      %1846 = vst [vmem:[%s170 + $0x40] sm:$0xff] %v1744
      %1847 = vst [vmem:[%s170 + $0x48] sm:$0xff] %v1747
      %1848 = vst [vmem:[%s170 + $0x50] sm:$0xff] %v1752
      %1849 = vst [vmem:[%s170 + $0x58] sm:$0xff] %v1755
      %1850 = vst [vmem:[%s170 + $0x60] sm:$0xff] %v1760
      %1851 = vst [vmem:[%s170 + $0x68] sm:$0xff] %v1763
      %1852 = vst [vmem:[%s170 + $0x70] sm:$0xff] %v1768
      %1853 = vst [vmem:[%s170 + $0x78] sm:$0xff] %v1771
      %1854 = vst [vmem:[%s170 + $0x80] sm:$0xff] %v1776
      %1855 = vst [vmem:[%s170 + $0x88] sm:$0xff] %v1779
      %1856 = vst [vmem:[%s170 + $0x90] sm:$0xff] %v1784
      %1857 = vst [vmem:[%s170 + $0x98] sm:$0xff] %v1787
      %1858 = vst [vmem:[%s170 + $0xa0] sm:$0xff] %v1792
      %1859 = vst [vmem:[%s170 + $0xa8] sm:$0xff] %v1795
      %1860 = vst [vmem:[%s170 + $0xb0] sm:$0xff] %v1800
      %1861 = vst [vmem:[%s170 + $0xb8] sm:$0xff] %v1803
      %1862 = vst [vmem:[%s170 + $0xc0] sm:$0xff] %v1808
      %1863 = vst [vmem:[%s170 + $0xc8] sm:$0xff] %v1811
      %1864 = vst [vmem:[%s170 + $0xd0] sm:$0xff] %v1816
      %1865 = vst [vmem:[%s170 + $0xd8] sm:$0xff] %v1819
      %1866 = vst [vmem:[%s170 + $0xe0] sm:$0xff] %v1824
      %1867 = vst [vmem:[%s170 + $0xe8] sm:$0xff] %v1827
      %1868 = vst [vmem:[%s170 + $0xf0] sm:$0xff] %v1832
      %1869 = vst [vmem:[%s170 + $0xf8] sm:$0xff] %v1835
      %p1870 = scmp.lt.s32.totalorder %s14, 7
      %s1871 = scalar_select %p1870, %s14, 7
      %s1872 = smul.addr %s1871, 32
      %s1873 = smul.addr %s1872, 8
      %s1874 = scalar_lea.vmem %s3, %s1873
      // Predicated region
      $region33: #{upsample_conv_layer.1} parent=31 // pred_check
        %p1875 = pneg %p100
      $region34: #{upsample_conv_layer.1} parent=31 // pred_check_branch
        %1877 = sbr.rel (%p1875) target = $region36
      $region35: #{upsample_conv_layer.1} parent=31 // pred_region
        _
      $region36: #{upsample_conv_layer.1} parent=31 // pred_fallthru
        _
    $region32: #{upsample_conv_layer.1} parent=5 // pred_fallthru
      _
    %p1878 = scmp.le.s32.totalorder 2, %s9
    // Predicated region
    $region37: #{upsample_conv_layer.1} parent=5 // pred_check
      %p1879 = pneg %p1878
    $region38: #{upsample_conv_layer.1} parent=5 // pred_check_branch
      %1881 = sbr.rel (%p1879) target = $region40
    $region39: #{upsample_conv_layer.1} parent=5 // pred_region
      %s1882 = ssub.s32 %s9, 2
      // Predicated region
      $region41: #{upsample_conv_layer.1} parent=39 // pred_check
        %p1883 = pneg %p106
      $region42: #{upsample_conv_layer.1} parent=39 // pred_check_branch
        %1885 = sbr.rel (%p1883) target = $region44
      $region43: #{upsample_conv_layer.1} parent=39 // pred_region
        %p1886 = scmp.lt.s32.totalorder %s15, 7
        %s1887 = scalar_select %p1886, %s15, 7
        %s1888 = smul.addr %s1887, 32
        %s1889 = smul.addr %s1888, 8
        %s1890 = scalar_lea.vmem %s3, %s1889
      $region44: #{upsample_conv_layer.1} parent=39 // pred_fallthru
        _
    $region40: #{upsample_conv_layer.1} parent=5 // pred_fallthru
      _
  $region6: #{upsample_conv_layer.1} parent=0 // loop_footer
    %s13 = sadd.s32 1, %s9
  $region7: #{upsample_conv_layer.1} parent=0 // loop_footer_branch
    %8 = sbr.rel target = $region3
  $region8: #{upsample_conv_layer.1} parent=0 // loop_exit
    _

</llo_original>
